<compile_context>
chip_gen: v7x
topology: tpu7x:2x2x1
jax: 0.10.0
libtpu: 0.0.40
codegen_flags: <defaults>
</compile_context>

<pallas_src>
import functools

import jax
import jax.numpy as jnp
from jax.experimental import pallas as pl
from jax.experimental.pallas import tpu as pltpu


# ----------------------------- helpers --------------------------------------
def _device_kind():
    try:
        return jax.devices()[0].device_kind.lower()
    except Exception:
        return ""


def _is_v7(kind):
    return ("v7" in kind) or ("tpu7" in kind) or ("7x" in kind)


def _tensorcores_per_chip():
    return 2 if _is_v7(_device_kind()) else 1


def _vmem_limit_bytes():
    # v7x has 64 MiB physical per TC -> leave headroom; v5e/v6e have 128 MiB.
    return (48 if _is_v7(_device_kind()) else 64) * 1024 * 1024


def _pick_b_tile(b, n, target_rows=256):
    """Largest batch tile with b_tile*N <= ~256 rows; require >=2 grid steps only
    on multi-TensorCore chips (v7x)."""
    cores = _tensorcores_per_chip()
    best = 1
    for cand in range(1, b + 1):
        if b % cand:
            continue
        if cand > 1 and cand * n > target_rows:
            continue
        if cores >= 2 and b >= 2 and (b // cand) < 2:
            continue
        best = cand
    return best


def _dreduce(yw, d, co):
    """Sum the D lane-blocks of width co: out[m, o] = sum_d yw[m, d*co + o]."""
    if d == 1:
        return yw
    width = yw.shape[-1]                       # d * co
    if (d & (d - 1)) == 0 and width % 128 == 0:
        # log2(D) XLU rolls + full-width VPU adds; valid prefix halves each step.
        blocks = d
        while blocks > 1:
            half = blocks // 2
            shift = width - half * co          # lane j picks lane j + half*co
            yw = yw + pltpu.roll(yw, shift, 1)
            blocks = half
        return yw[:, :co]
    acc = yw[:, :co]                           # generic fallback
    for t in range(1, d):
        acc = acc + yw[:, t * co:(t + 1) * co]
    return acc


# ------------------------------ kernel ---------------------------------------
def _rgsl_cell_kernel(ins_ref, st_ref, sup_ref, wbig_ref, wus_ref,
                      embw_ref, bz_ref, br_ref, bu_ref, h_ref,
                      *, cheb_k, embed_dim, hidden_dim, b_tile):
    co = hidden_dim
    n = st_ref.shape[1]
    m = b_tile * n
    dco = embed_dim * co

    state = st_ref[...].astype(jnp.float32).reshape(m, co)         # [M, Co] f32
    ins = ins_ref[...].astype(jnp.bfloat16)                        # [Bt, N, Cpad]
    sup = sup_ref[...] if cheb_k >= 2 else None                    # [(K-1)*N, N] bf16

    def bcast(a):                                                  # [N, W] -> [M, W]
        if b_tile == 1:
            return a
        return jnp.concatenate([a] * b_tile, axis=0)               # sublane concat

    emb_w = bcast(embw_ref[...])                                   # [M, D*Co] f32

    def apply_supports(v_bf):
        """v_bf: [Bt, N, W] bf16 -> [T_0 v, ..., T_{K-1} v], each [M, W] bf16."""
        outs = [v_bf.reshape(m, v_bf.shape[-1])]                   # T_0 = identity
        if cheb_k >= 2:
            per_b = [jnp.dot(sup, v_bf[bb], preferred_element_type=jnp.float32)
                     for bb in range(b_tile)]                      # [(K-1)*N, W] each
            for k in range(1, cheb_k):
                rows = [pb[(k - 1) * n:k * n, :] for pb in per_b]  # sublane slices
                tk = rows[0] if b_tile == 1 else jnp.concatenate(rows, axis=0)
                outs.append(tk.astype(jnp.bfloat16))
        return outs

    def finish(y_dco, bias_ref):                                   # [M, D*Co] -> [M, Co]
        yw = y_dco * emb_w                                         # one wide VPU mult
        return _dreduce(yw, embed_dim, co) + bcast(bias_ref[...])

    # ---- fused (z | r | update-x) matmul, accumulated over Chebyshev order ----
    tks = apply_supports(ins)
    y_big = jnp.dot(tks[0], wbig_ref[0], preferred_element_type=jnp.float32)
    for k in range(1, cheb_k):
        y_big = y_big + jnp.dot(tks[k], wbig_ref[k],
                                preferred_element_type=jnp.float32)
    # y_big: [M, 3*D*Co]; 128-aligned column groups: z | r | update (x-channels only)

    z = jax.nn.sigmoid(finish(y_big[:, 0:dco], bz_ref))            # [M, Co]
    r = jax.nn.sigmoid(finish(y_big[:, dco:2 * dco], br_ref))      # [M, Co]

    # ---- candidate: add the state-channel contribution with gated state ----
    zs = (z * state).astype(jnp.bfloat16).reshape(b_tile, n, co)   # [Bt, N, Co]
    tkw = apply_supports(zs)
    y_u = y_big[:, 2 * dco:3 * dco]
    for k in range(cheb_k):
        y_u = y_u + jnp.dot(tkw[k], wus_ref[k],
                            preferred_element_type=jnp.float32)
    hc = jnp.tanh(finish(y_u, bu_ref))                             # [M, Co]

    h = r * state + (1.0 - r) * hc
    h_ref[...] = h.reshape(b_tile, n, co).astype(h_ref.dtype)


# ------------------------------ wrapper ---------------------------------------
def rgsl_cell(x, state, node_embeddings, learned_tilde, params, *, cheb_k, b_tile=None):
    """Pallas implementation of RGSLCell.forward."""
    b, n, ci = x.shape
    co = state.shape[-1]
    d = node_embeddings.shape[-1]
    c = ci + co
    c_pad = ((c + 127) // 128) * 128
    dco = d * co

    if b_tile is None:
        b_tile = _pick_b_tile(b, n)
    assert b % b_tile == 0
    grid = (b // b_tile,)

    emb = node_embeddings.astype(jnp.float32)
    lap = learned_tilde.astype(jnp.float32)

    # ---------- batch-invariant precompute (hoisted out of the kernel) ----------
    # Chebyshev supports T_1..T_{K-1} (T_0 = I handled implicitly), stacked on rows.
    if cheb_k >= 2:
        full = [jnp.eye(n, dtype=jnp.float32), lap]
        for _ in range(2, cheb_k):
            full.append(2.0 * (lap @ full[-1]) - full[-2])
        supstack = jnp.concatenate(full[1:cheb_k], axis=0)           # [(K-1)*N, N]
    else:
        supstack = jnp.zeros((n, n), jnp.float32)                    # dummy, unused
    supstack = supstack.astype(jnp.bfloat16)

    gwp = params["gate_weights_pool"].astype(jnp.float32)            # [D, K, C, 2Co]
    uwp = params["update_weights_pool"].astype(jnp.float32)          # [D, K, C, Co]

    def flat(pool):
        # [D, K, C', O] -> [K, C', D*O]   (columns are d-major, o-minor)
        d_, k_, c_, o_ = pool.shape
        return jnp.transpose(pool, (1, 2, 0, 3)).reshape(k_, c_, d_ * o_)

    wz = flat(gwp[..., :co])                                         # [K, C, D*Co]
    wr = flat(gwp[..., co:])                                         # [K, C, D*Co]
    wux = flat(uwp.at[:, :, ci:, :].set(0.0))                        # x-channel rows only
    wbig = jnp.concatenate([wz, wr, wux], axis=-1)                   # [K, C, 3*D*Co]
    wbig = jnp.pad(wbig, ((0, 0), (0, c_pad - c), (0, 0))).astype(jnp.bfloat16)
    wus = flat(uwp[:, :, ci:, :]).astype(jnp.bfloat16)               # [K, Co, D*Co]

    gate_bias = emb @ params["gate_bias_pool"].astype(jnp.float32)   # [N, 2Co]
    bz, br = gate_bias[:, :co], gate_bias[:, co:]
    bu = emb @ params["update_bias_pool"].astype(jnp.float32)        # [N, Co]
    emb_wide = jnp.repeat(emb, co, axis=1)                           # [N, D*Co]

    ins = jnp.concatenate([x.astype(jnp.float32), state.astype(jnp.float32)], axis=-1)
    ins_pad = jnp.pad(ins, ((0, 0), (0, 0), (0, c_pad - c)))         # [B, N, Cpad]
    state_f32 = state.astype(jnp.float32)

    kernel = functools.partial(_rgsl_cell_kernel, cheb_k=cheb_k, embed_dim=d,
                               hidden_dim=co, b_tile=b_tile)

    flops = int(2 * b * max(cheb_k - 1, 0) * n * n * c_pad           # supports on ins
                + 2 * b * n * cheb_k * c_pad * (3 * dco)             # fused big matmul
                + 2 * b * max(cheb_k - 1, 0) * n * n * co            # supports on z*state
                + 2 * b * n * cheb_k * co * dco                      # correction matmuls
                + 12 * b * n * dco)                                  # elementwise approx
    cost = pl.CostEstimate(
        flops=flops,
        transcendentals=int(3 * b * n * co),
        bytes_accessed=int(4 * (ins_pad.size + state_f32.size + b * n * co)
                           + 2 * (supstack.size + wbig.size + wus.size)
                           + 4 * (emb_wide.size + 3 * n * co)))

    return pl.pallas_call(
        kernel,
        out_shape=jax.ShapeDtypeStruct((b, n, co), jnp.float32),
        grid=grid,
        in_specs=[
            pl.BlockSpec((b_tile, n, c_pad), lambda i: (i, 0, 0)),   # ins (padded)
            pl.BlockSpec((b_tile, n, co), lambda i: (i, 0, 0)),      # state
            pl.BlockSpec(supstack.shape, lambda i: (0, 0)),          # Chebyshev supports
            pl.BlockSpec(wbig.shape, lambda i: (0, 0, 0)),           # fused z|r|u_x weights
            pl.BlockSpec(wus.shape, lambda i: (0, 0, 0)),            # update state-row weights
            pl.BlockSpec((n, dco), lambda i: (0, 0)),                # emb_wide
            pl.BlockSpec((n, co), lambda i: (0, 0)),                 # bz
            pl.BlockSpec((n, co), lambda i: (0, 0)),                 # br
            pl.BlockSpec((n, co), lambda i: (0, 0)),                 # bu
        ],
        out_specs=pl.BlockSpec((b_tile, n, co), lambda i: (i, 0, 0)),
        compiler_params=pltpu.CompilerParams(
            dimension_semantics=("parallel",),
            vmem_limit_bytes=_vmem_limit_bytes()),
        cost_estimate=cost,
    )(ins_pad, state_f32, supstack, wbig, wus, emb_wide, bz, br, bu)


# ----------------------- pure-JAX reference (for validation) -----------------------
def _avwgcn_ref(xin, emb, lap, weights_pool, bias_pool, cheb_k):
    n = lap.shape[0]
    supports = [jnp.eye(n, dtype=jnp.float32), lap]
    for _ in range(2, cheb_k):
        supports.append(2.0 * lap @ supports[-1] - supports[-2])
    supports = jnp.stack(supports[:cheb_k], axis=0)                    # [K, N, N]
    weights = jnp.einsum('nd,dkio->nkio', emb, weights_pool)           # [N, K, Ci, Co]
    bias = emb @ bias_pool                                             # [N, Co]
    x_g = jnp.einsum('knm,bmc->bknc', supports, xin)                   # [B, K, N, Ci]
    x_g = jnp.transpose(x_g, (0, 2, 1, 3))                             # [B, N, K, Ci]
    return jnp.einsum('bnki,nkio->bno', x_g, weights) + bias           # [B, N, Co]


def _rgsl_cell_ref(x, state, emb, lap, params, cheb_k, hidden):
    ins = jnp.concatenate([x, state], axis=-1)
    zr = jax.nn.sigmoid(_avwgcn_ref(ins, emb, lap,
                                    params["gate_weights_pool"],
                                    params["gate_bias_pool"], cheb_k))
    z, r = zr[..., :hidden], zr[..., hidden:]
    cand = jnp.concatenate([x, z * state], axis=-1)
    hc = jnp.tanh(_avwgcn_ref(cand, emb, lap,
                              params["update_weights_pool"],
                              params["update_bias_pool"], cheb_k))
    return r * state + (1.0 - r) * hc


if __name__ == "__main__":
    B, N, DIM_IN, DIM_OUT, CHEB_K, EMBED_DIM = 2, 16, 4, 32, 3, 8
    C = DIM_IN + DIM_OUT

    key = jax.random.PRNGKey(0)
    keys = jax.random.split(key, 8)
    x = jax.random.normal(keys[0], (B, N, DIM_IN), jnp.float32)
    state = jax.random.normal(keys[1], (B, N, DIM_OUT), jnp.float32)
    node_embeddings = jax.random.normal(keys[2], (N, EMBED_DIM), jnp.float32) * 0.5
    a = jax.random.normal(keys[3], (N, N), jnp.float32) * 0.1
    learned_tilde = 0.5 * (a + a.T)   # symmetric scaled-Laplacian-like matrix

    params = {
        "gate_weights_pool":
            jax.random.normal(keys[4], (EMBED_DIM, CHEB_K, C, 2 * DIM_OUT), jnp.float32) * 0.1,
        "gate_bias_pool":
            jax.random.normal(keys[5], (EMBED_DIM, 2 * DIM_OUT), jnp.float32) * 0.1,
        "update_weights_pool":
            jax.random.normal(keys[6], (EMBED_DIM, CHEB_K, C, DIM_OUT), jnp.float32) * 0.1,
        "update_bias_pool":
            jax.random.normal(keys[7], (EMBED_DIM, DIM_OUT), jnp.float32) * 0.1,
    }

    h = rgsl_cell(x, state, node_embeddings, learned_tilde, params, cheb_k=CHEB_K)
    h = jax.block_until_ready(h)

    h_ref = _rgsl_cell_ref(x, state, node_embeddings, learned_tilde, params, CHEB_K, DIM_OUT)
    assert h.shape == (B, N, DIM_OUT)
    # bf16 MXU operands with f32 accumulation -> slightly looser tolerance.
    if not jnp.allclose(h, h_ref, rtol=5e-2, atol=5e-2):
        raise AssertionError("Pallas kernel does not match reference")

    print("KERNEL_OK")
</pallas_src>

<mosaic_0001>
module attributes {stable_mosaic.version = 11 : i64} {
  func.func @_rgsl_cell_kernel(%arg0: i32, %arg1: memref<2x16x128xf32, #tpu.memory_space<vmem>>, %arg2: memref<2x16x32xf32, #tpu.memory_space<vmem>>, %arg3: memref<32x16xbf16, #tpu.memory_space<vmem>>, %arg4: memref<3x128x768xbf16, #tpu.memory_space<vmem>>, %arg5: memref<3x32x256xbf16, #tpu.memory_space<vmem>>, %arg6: memref<16x256xf32, #tpu.memory_space<vmem>>, %arg7: memref<16x32xf32, #tpu.memory_space<vmem>>, %arg8: memref<16x32xf32, #tpu.memory_space<vmem>>, %arg9: memref<16x32xf32, #tpu.memory_space<vmem>>, %arg10: memref<2x16x32xf32, #tpu.memory_space<vmem>>) attributes {dimension_semantics = [#tpu.dimension_semantics<parallel>], iteration_bounds = array<i64: 1>, scalar_prefetch = 0 : i64, scratch_operands = 0 : i64, tpu.core_type = #tpu.core_type<tc>, window_params = [{transform_indices = @transform_0, window_bounds = array<i64: 2, 16, 128>}, {transform_indices = @transform_1, window_bounds = array<i64: 2, 16, 32>}, {pipeline_mode = #tpu.pipeline_mode<synchronous>, transform_indices = @transform_2, window_bounds = array<i64: 32, 16>}, {pipeline_mode = #tpu.pipeline_mode<synchronous>, transform_indices = @transform_3, window_bounds = array<i64: 3, 128, 768>}, {pipeline_mode = #tpu.pipeline_mode<synchronous>, transform_indices = @transform_4, window_bounds = array<i64: 3, 32, 256>}, {pipeline_mode = #tpu.pipeline_mode<synchronous>, transform_indices = @transform_5, window_bounds = array<i64: 16, 256>}, {pipeline_mode = #tpu.pipeline_mode<synchronous>, transform_indices = @transform_6, window_bounds = array<i64: 16, 32>}, {pipeline_mode = #tpu.pipeline_mode<synchronous>, transform_indices = @transform_7, window_bounds = array<i64: 16, 32>}, {pipeline_mode = #tpu.pipeline_mode<synchronous>, transform_indices = @transform_8, window_bounds = array<i64: 16, 32>}, {transform_indices = @transform_9, window_bounds = array<i64: 2, 16, 32>}]} {
    %c0 = arith.constant 0 : index
    %c0_0 = arith.constant 0 : index
    %c0_1 = arith.constant 0 : index
    %0 = vector.load %arg2[%c0, %c0_0, %c0_1] : memref<2x16x32xf32, #tpu.memory_space<vmem>>, vector<2x16x32xf32>
    %1 = vector.shape_cast %0 : vector<2x16x32xf32> to vector<32x32xf32>
    %c0_2 = arith.constant 0 : index
    %c0_3 = arith.constant 0 : index
    %c0_4 = arith.constant 0 : index
    %2 = vector.load %arg1[%c0_2, %c0_3, %c0_4] : memref<2x16x128xf32, #tpu.memory_space<vmem>>, vector<2x16x128xf32>
    %3 = arith.truncf %2 : vector<2x16x128xf32> to vector<2x16x128xbf16>
    %c0_5 = arith.constant 0 : index
    %c0_6 = arith.constant 0 : index
    %4 = vector.load %arg3[%c0_5, %c0_6] : memref<32x16xbf16, #tpu.memory_space<vmem>>, vector<32x16xbf16>
    %c0_7 = arith.constant 0 : index
    %c0_8 = arith.constant 0 : index
    %5 = vector.load %arg6[%c0_7, %c0_8] : memref<16x256xf32, #tpu.memory_space<vmem>>, vector<16x256xf32>
    %6 = tpu.concatenate %5, %5 in 0 : vector<16x256xf32>, vector<16x256xf32> -> vector<32x256xf32>
    %7 = vector.shape_cast %3 : vector<2x16x128xbf16> to vector<32x128xbf16>
    %8 = vector.extract_strided_slice %3 {offsets = [0, 0, 0], sizes = [1, 16, 128], strides = [1, 1, 1]} : vector<2x16x128xbf16> to vector<1x16x128xbf16>
    %9 = vector.shape_cast %8 : vector<1x16x128xbf16> to vector<16x128xbf16>
    %cst = arith.constant dense<0.000000e+00> : vector<32x128xf32>
    %10 = tpu.matmul %4, %9, %cst {dimension_numbers = #tpu.dot_dimension_numbers<[1], [0], [0], [1], [0, 0, 1, 1], [], []>} : vector<32x16xbf16>, vector<16x128xbf16>, vector<32x128xf32> -> vector<32x128xf32>
    %11 = vector.extract_strided_slice %3 {offsets = [1, 0, 0], sizes = [1, 16, 128], strides = [1, 1, 1]} : vector<2x16x128xbf16> to vector<1x16x128xbf16>
    %12 = vector.shape_cast %11 : vector<1x16x128xbf16> to vector<16x128xbf16>
    %cst_9 = arith.constant dense<0.000000e+00> : vector<32x128xf32>
    %13 = tpu.matmul %4, %12, %cst_9 {dimension_numbers = #tpu.dot_dimension_numbers<[1], [0], [0], [1], [0, 0, 1, 1], [], []>} : vector<32x16xbf16>, vector<16x128xbf16>, vector<32x128xf32> -> vector<32x128xf32>
    %14 = vector.extract_strided_slice %10 {offsets = [0, 0], sizes = [16, 128], strides = [1, 1]} : vector<32x128xf32> to vector<16x128xf32>
    %15 = vector.extract_strided_slice %13 {offsets = [0, 0], sizes = [16, 128], strides = [1, 1]} : vector<32x128xf32> to vector<16x128xf32>
    %16 = tpu.concatenate %14, %15 in 0 : vector<16x128xf32>, vector<16x128xf32> -> vector<32x128xf32>
    %17 = arith.truncf %16 : vector<32x128xf32> to vector<32x128xbf16>
    %18 = vector.extract_strided_slice %10 {offsets = [16, 0], sizes = [16, 128], strides = [1, 1]} : vector<32x128xf32> to vector<16x128xf32>
    %19 = vector.extract_strided_slice %13 {offsets = [16, 0], sizes = [16, 128], strides = [1, 1]} : vector<32x128xf32> to vector<16x128xf32>
    %20 = tpu.concatenate %18, %19 in 0 : vector<16x128xf32>, vector<16x128xf32> -> vector<32x128xf32>
    %21 = arith.truncf %20 : vector<32x128xf32> to vector<32x128xbf16>
    %c0_10 = arith.constant 0 : index
    %c0_11 = arith.constant 0 : index
    %c0_12 = arith.constant 0 : index
    %22 = vector.load %arg4[%c0_10, %c0_11, %c0_12] : memref<3x128x768xbf16, #tpu.memory_space<vmem>>, vector<1x128x768xbf16>
    %23 = vector.shape_cast %22 : vector<1x128x768xbf16> to vector<128x768xbf16>
    %cst_13 = arith.constant dense<0.000000e+00> : vector<32x768xf32>
    %24 = tpu.matmul %7, %23, %cst_13 {dimension_numbers = #tpu.dot_dimension_numbers<[1], [0], [0], [1], [0, 0, 1, 1], [], []>} : vector<32x128xbf16>, vector<128x768xbf16>, vector<32x768xf32> -> vector<32x768xf32>
    %c1 = arith.constant 1 : index
    %c0_14 = arith.constant 0 : index
    %c0_15 = arith.constant 0 : index
    %25 = vector.load %arg4[%c1, %c0_14, %c0_15] : memref<3x128x768xbf16, #tpu.memory_space<vmem>>, vector<1x128x768xbf16>
    %26 = vector.shape_cast %25 : vector<1x128x768xbf16> to vector<128x768xbf16>
    %cst_16 = arith.constant dense<0.000000e+00> : vector<32x768xf32>
    %27 = tpu.matmul %17, %26, %cst_16 {dimension_numbers = #tpu.dot_dimension_numbers<[1], [0], [0], [1], [0, 0, 1, 1], [], []>} : vector<32x128xbf16>, vector<128x768xbf16>, vector<32x768xf32> -> vector<32x768xf32>
    %28 = arith.addf %24, %27 : vector<32x768xf32>
    %c2 = arith.constant 2 : index
    %c0_17 = arith.constant 0 : index
    %c0_18 = arith.constant 0 : index
    %29 = vector.load %arg4[%c2, %c0_17, %c0_18] : memref<3x128x768xbf16, #tpu.memory_space<vmem>>, vector<1x128x768xbf16>
    %30 = vector.shape_cast %29 : vector<1x128x768xbf16> to vector<128x768xbf16>
    %cst_19 = arith.constant dense<0.000000e+00> : vector<32x768xf32>
    %31 = tpu.matmul %21, %30, %cst_19 {dimension_numbers = #tpu.dot_dimension_numbers<[1], [0], [0], [1], [0, 0, 1, 1], [], []>} : vector<32x128xbf16>, vector<128x768xbf16>, vector<32x768xf32> -> vector<32x768xf32>
    %32 = arith.addf %28, %31 : vector<32x768xf32>
    %33 = vector.extract_strided_slice %32 {offsets = [0, 0], sizes = [32, 256], strides = [1, 1]} : vector<32x768xf32> to vector<32x256xf32>
    %34 = arith.mulf %33, %6 : vector<32x256xf32>
    %c128_i32 = arith.constant 128 : i32
    %35 = tpu.dynamic_rotate %34 by %c128_i32 dim 1 : vector<32x256xf32>, i32 -> vector<32x256xf32>
    %36 = arith.addf %34, %35 : vector<32x256xf32>
    %c192_i32 = arith.constant 192 : i32
    %37 = tpu.dynamic_rotate %36 by %c192_i32 dim 1 : vector<32x256xf32>, i32 -> vector<32x256xf32>
    %38 = arith.addf %36, %37 : vector<32x256xf32>
    %c224_i32 = arith.constant 224 : i32
    %39 = tpu.dynamic_rotate %38 by %c224_i32 dim 1 : vector<32x256xf32>, i32 -> vector<32x256xf32>
    %40 = arith.addf %38, %39 : vector<32x256xf32>
    %41 = vector.extract_strided_slice %40 {offsets = [0, 0], sizes = [32, 32], strides = [1, 1]} : vector<32x256xf32> to vector<32x32xf32>
    %c0_20 = arith.constant 0 : index
    %c0_21 = arith.constant 0 : index
    %42 = vector.load %arg7[%c0_20, %c0_21] : memref<16x32xf32, #tpu.memory_space<vmem>>, vector<16x32xf32>
    %43 = tpu.concatenate %42, %42 in 0 : vector<16x32xf32>, vector<16x32xf32> -> vector<32x32xf32>
    %44 = arith.addf %41, %43 : vector<32x32xf32>
    %45 = arith.negf %44 : vector<32x32xf32>
    %46 = math.exp %45 : vector<32x32xf32>
    %cst_22 = arith.constant 1.000000e+00 : f32
    %47 = vector.broadcast %cst_22 : f32 to vector<32x32xf32>
    %48 = arith.addf %47, %46 : vector<32x32xf32>
    %49 = arith.divf %47, %48 : vector<32x32xf32>
    %50 = vector.extract_strided_slice %32 {offsets = [0, 256], sizes = [32, 256], strides = [1, 1]} : vector<32x768xf32> to vector<32x256xf32>
    %51 = arith.mulf %50, %6 : vector<32x256xf32>
    %c128_i32_23 = arith.constant 128 : i32
    %52 = tpu.dynamic_rotate %51 by %c128_i32_23 dim 1 : vector<32x256xf32>, i32 -> vector<32x256xf32>
    %53 = arith.addf %51, %52 : vector<32x256xf32>
    %c192_i32_24 = arith.constant 192 : i32
    %54 = tpu.dynamic_rotate %53 by %c192_i32_24 dim 1 : vector<32x256xf32>, i32 -> vector<32x256xf32>
    %55 = arith.addf %53, %54 : vector<32x256xf32>
    %c224_i32_25 = arith.constant 224 : i32
    %56 = tpu.dynamic_rotate %55 by %c224_i32_25 dim 1 : vector<32x256xf32>, i32 -> vector<32x256xf32>
    %57 = arith.addf %55, %56 : vector<32x256xf32>
    %58 = vector.extract_strided_slice %57 {offsets = [0, 0], sizes = [32, 32], strides = [1, 1]} : vector<32x256xf32> to vector<32x32xf32>
    %c0_26 = arith.constant 0 : index
    %c0_27 = arith.constant 0 : index
    %59 = vector.load %arg8[%c0_26, %c0_27] : memref<16x32xf32, #tpu.memory_space<vmem>>, vector<16x32xf32>
    %60 = tpu.concatenate %59, %59 in 0 : vector<16x32xf32>, vector<16x32xf32> -> vector<32x32xf32>
    %61 = arith.addf %58, %60 : vector<32x32xf32>
    %62 = arith.negf %61 : vector<32x32xf32>
    %63 = math.exp %62 : vector<32x32xf32>
    %cst_28 = arith.constant 1.000000e+00 : f32
    %64 = vector.broadcast %cst_28 : f32 to vector<32x32xf32>
    %65 = arith.addf %64, %63 : vector<32x32xf32>
    %66 = arith.divf %64, %65 : vector<32x32xf32>
    %67 = arith.mulf %49, %1 : vector<32x32xf32>
    %68 = arith.truncf %67 : vector<32x32xf32> to vector<32x32xbf16>
    %69 = vector.shape_cast %68 : vector<32x32xbf16> to vector<2x16x32xbf16>
    %70 = vector.shape_cast %69 : vector<2x16x32xbf16> to vector<32x32xbf16>
    %71 = vector.extract_strided_slice %69 {offsets = [0, 0, 0], sizes = [1, 16, 32], strides = [1, 1, 1]} : vector<2x16x32xbf16> to vector<1x16x32xbf16>
    %72 = vector.shape_cast %71 : vector<1x16x32xbf16> to vector<16x32xbf16>
    %cst_29 = arith.constant dense<0.000000e+00> : vector<32x32xf32>
    %73 = tpu.matmul %4, %72, %cst_29 {dimension_numbers = #tpu.dot_dimension_numbers<[1], [0], [0], [1], [0, 0, 1, 1], [], []>} : vector<32x16xbf16>, vector<16x32xbf16>, vector<32x32xf32> -> vector<32x32xf32>
    %74 = vector.extract_strided_slice %69 {offsets = [1, 0, 0], sizes = [1, 16, 32], strides = [1, 1, 1]} : vector<2x16x32xbf16> to vector<1x16x32xbf16>
    %75 = vector.shape_cast %74 : vector<1x16x32xbf16> to vector<16x32xbf16>
    %cst_30 = arith.constant dense<0.000000e+00> : vector<32x32xf32>
    %76 = tpu.matmul %4, %75, %cst_30 {dimension_numbers = #tpu.dot_dimension_numbers<[1], [0], [0], [1], [0, 0, 1, 1], [], []>} : vector<32x16xbf16>, vector<16x32xbf16>, vector<32x32xf32> -> vector<32x32xf32>
    %77 = vector.extract_strided_slice %73 {offsets = [0, 0], sizes = [16, 32], strides = [1, 1]} : vector<32x32xf32> to vector<16x32xf32>
    %78 = vector.extract_strided_slice %76 {offsets = [0, 0], sizes = [16, 32], strides = [1, 1]} : vector<32x32xf32> to vector<16x32xf32>
    %79 = tpu.concatenate %77, %78 in 0 : vector<16x32xf32>, vector<16x32xf32> -> vector<32x32xf32>
    %80 = arith.truncf %79 : vector<32x32xf32> to vector<32x32xbf16>
    %81 = vector.extract_strided_slice %73 {offsets = [16, 0], sizes = [16, 32], strides = [1, 1]} : vector<32x32xf32> to vector<16x32xf32>
    %82 = vector.extract_strided_slice %76 {offsets = [16, 0], sizes = [16, 32], strides = [1, 1]} : vector<32x32xf32> to vector<16x32xf32>
    %83 = tpu.concatenate %81, %82 in 0 : vector<16x32xf32>, vector<16x32xf32> -> vector<32x32xf32>
    %84 = arith.truncf %83 : vector<32x32xf32> to vector<32x32xbf16>
    %85 = vector.extract_strided_slice %32 {offsets = [0, 512], sizes = [32, 256], strides = [1, 1]} : vector<32x768xf32> to vector<32x256xf32>
    %c0_31 = arith.constant 0 : index
    %c0_32 = arith.constant 0 : index
    %c0_33 = arith.constant 0 : index
    %86 = vector.load %arg5[%c0_31, %c0_32, %c0_33] : memref<3x32x256xbf16, #tpu.memory_space<vmem>>, vector<1x32x256xbf16>
    %87 = vector.shape_cast %86 : vector<1x32x256xbf16> to vector<32x256xbf16>
    %cst_34 = arith.constant dense<0.000000e+00> : vector<32x256xf32>
    %88 = tpu.matmul %70, %87, %cst_34 {dimension_numbers = #tpu.dot_dimension_numbers<[1], [0], [0], [1], [0, 0, 1, 1], [], []>} : vector<32x32xbf16>, vector<32x256xbf16>, vector<32x256xf32> -> vector<32x256xf32>
    %89 = arith.addf %85, %88 : vector<32x256xf32>
    %c1_35 = arith.constant 1 : index
    %c0_36 = arith.constant 0 : index
    %c0_37 = arith.constant 0 : index
    %90 = vector.load %arg5[%c1_35, %c0_36, %c0_37] : memref<3x32x256xbf16, #tpu.memory_space<vmem>>, vector<1x32x256xbf16>
    %91 = vector.shape_cast %90 : vector<1x32x256xbf16> to vector<32x256xbf16>
    %cst_38 = arith.constant dense<0.000000e+00> : vector<32x256xf32>
    %92 = tpu.matmul %80, %91, %cst_38 {dimension_numbers = #tpu.dot_dimension_numbers<[1], [0], [0], [1], [0, 0, 1, 1], [], []>} : vector<32x32xbf16>, vector<32x256xbf16>, vector<32x256xf32> -> vector<32x256xf32>
    %93 = arith.addf %89, %92 : vector<32x256xf32>
    %c2_39 = arith.constant 2 : index
    %c0_40 = arith.constant 0 : index
    %c0_41 = arith.constant 0 : index
    %94 = vector.load %arg5[%c2_39, %c0_40, %c0_41] : memref<3x32x256xbf16, #tpu.memory_space<vmem>>, vector<1x32x256xbf16>
    %95 = vector.shape_cast %94 : vector<1x32x256xbf16> to vector<32x256xbf16>
    %cst_42 = arith.constant dense<0.000000e+00> : vector<32x256xf32>
    %96 = tpu.matmul %84, %95, %cst_42 {dimension_numbers = #tpu.dot_dimension_numbers<[1], [0], [0], [1], [0, 0, 1, 1], [], []>} : vector<32x32xbf16>, vector<32x256xbf16>, vector<32x256xf32> -> vector<32x256xf32>
    %97 = arith.addf %93, %96 : vector<32x256xf32>
    %98 = arith.mulf %97, %6 : vector<32x256xf32>
    %c128_i32_43 = arith.constant 128 : i32
    %99 = tpu.dynamic_rotate %98 by %c128_i32_43 dim 1 : vector<32x256xf32>, i32 -> vector<32x256xf32>
    %100 = arith.addf %98, %99 : vector<32x256xf32>
    %c192_i32_44 = arith.constant 192 : i32
    %101 = tpu.dynamic_rotate %100 by %c192_i32_44 dim 1 : vector<32x256xf32>, i32 -> vector<32x256xf32>
    %102 = arith.addf %100, %101 : vector<32x256xf32>
    %c224_i32_45 = arith.constant 224 : i32
    %103 = tpu.dynamic_rotate %102 by %c224_i32_45 dim 1 : vector<32x256xf32>, i32 -> vector<32x256xf32>
    %104 = arith.addf %102, %103 : vector<32x256xf32>
    %105 = vector.extract_strided_slice %104 {offsets = [0, 0], sizes = [32, 32], strides = [1, 1]} : vector<32x256xf32> to vector<32x32xf32>
    %c0_46 = arith.constant 0 : index
    %c0_47 = arith.constant 0 : index
    %106 = vector.load %arg9[%c0_46, %c0_47] : memref<16x32xf32, #tpu.memory_space<vmem>>, vector<16x32xf32>
    %107 = tpu.concatenate %106, %106 in 0 : vector<16x32xf32>, vector<16x32xf32> -> vector<32x32xf32>
    %108 = arith.addf %105, %107 : vector<32x32xf32>
    %109 = math.tanh %108 : vector<32x32xf32>
    %110 = arith.mulf %66, %1 : vector<32x32xf32>
    %cst_48 = arith.constant 1.000000e+00 : f32
    %111 = vector.broadcast %cst_48 : f32 to vector<32x32xf32>
    %112 = arith.subf %111, %66 : vector<32x32xf32>
    %113 = arith.mulf %112, %109 : vector<32x32xf32>
    %114 = arith.addf %110, %113 : vector<32x32xf32>
    %115 = vector.shape_cast %114 : vector<32x32xf32> to vector<2x16x32xf32>
    %c0_49 = arith.constant 0 : index
    %c0_50 = arith.constant 0 : index
    %c0_51 = arith.constant 0 : index
    %116 = vector.load %arg10[%c0_49, %c0_50, %c0_51] : memref<2x16x32xf32, #tpu.memory_space<vmem>>, vector<2x16x32xf32>
    tpu.vector_store %arg10[%c0_49, %c0_50, %c0_51], %115 {strides = array<i32>} : memref<2x16x32xf32, #tpu.memory_space<vmem>>, vector<2x16x32xf32>,
    return
  }
  func.func @transform_0(%arg0: i32) -> (i32, i32, i32) {
    %c0_i32 = arith.constant 0 : i32
    %c0_i32_0 = arith.constant 0 : i32
    %c0_i32_1 = arith.constant 0 : i32
    return %arg0, %c0_i32, %c0_i32_0 : i32, i32, i32
  }
  func.func @transform_1(%arg0: i32) -> (i32, i32, i32) {
    %c0_i32 = arith.constant 0 : i32
    %c0_i32_0 = arith.constant 0 : i32
    %c0_i32_1 = arith.constant 0 : i32
    return %arg0, %c0_i32, %c0_i32_0 : i32, i32, i32
  }
  func.func @transform_2(%arg0: i32) -> (i32, i32) {
    %c0_i32 = arith.constant 0 : i32
    %c0_i32_0 = arith.constant 0 : i32
    %c0_i32_1 = arith.constant 0 : i32
    return %c0_i32, %c0_i32_0 : i32, i32
  }
  func.func @transform_3(%arg0: i32) -> (i32, i32, i32) {
    %c0_i32 = arith.constant 0 : i32
    %c0_i32_0 = arith.constant 0 : i32
    %c0_i32_1 = arith.constant 0 : i32
    %c0_i32_2 = arith.constant 0 : i32
    return %c0_i32, %c0_i32_0, %c0_i32_1 : i32, i32, i32
  }
  func.func @transform_4(%arg0: i32) -> (i32, i32, i32) {
    %c0_i32 = arith.constant 0 : i32
    %c0_i32_0 = arith.constant 0 : i32
    %c0_i32_1 = arith.constant 0 : i32
    %c0_i32_2 = arith.constant 0 : i32
    return %c0_i32, %c0_i32_0, %c0_i32_1 : i32, i32, i32
  }
  func.func @transform_5(%arg0: i32) -> (i32, i32) {
    %c0_i32 = arith.constant 0 : i32
    %c0_i32_0 = arith.constant 0 : i32
    %c0_i32_1 = arith.constant 0 : i32
    return %c0_i32, %c0_i32_0 : i32, i32
  }
  func.func @transform_6(%arg0: i32) -> (i32, i32) {
    %c0_i32 = arith.constant 0 : i32
    %c0_i32_0 = arith.constant 0 : i32
    %c0_i32_1 = arith.constant 0 : i32
    return %c0_i32, %c0_i32_0 : i32, i32
  }
  func.func @transform_7(%arg0: i32) -> (i32, i32) {
    %c0_i32 = arith.constant 0 : i32
    %c0_i32_0 = arith.constant 0 : i32
    %c0_i32_1 = arith.constant 0 : i32
    return %c0_i32, %c0_i32_0 : i32, i32
  }
  func.func @transform_8(%arg0: i32) -> (i32, i32) {
    %c0_i32 = arith.constant 0 : i32
    %c0_i32_0 = arith.constant 0 : i32
    %c0_i32_1 = arith.constant 0 : i32
    return %c0_i32, %c0_i32_0 : i32, i32
  }
  func.func @transform_9(%arg0: i32) -> (i32, i32, i32) {
    %c0_i32 = arith.constant 0 : i32
    %c0_i32_0 = arith.constant 0 : i32
    %c0_i32_1 = arith.constant 0 : i32
    return %arg0, %c0_i32, %c0_i32_0 : i32, i32, i32
  }
}

</mosaic_0001>

<llo_original>
// kernel: tpu_custom_call.1
$region0: #{tpu_custom_call.1}
  #allocation0 [shape = 'u32[]', space=smem, size = 0x4, offset = 0x4, fixed_abs, tag = 'smem constant byte address 0x4 - core index']
  #allocation1 [shape = 'u32[144,128]{1,0:T(1,128)}', space=vmem, size = 0x12000, scoped, tag = 'internal scratch']
  %s0 = inlined_call_operand.hbm [shape: f32[2,16,128], index: 0, kind: input, shape index: {}]
  %s1 = inlined_call_operand.hbm [shape: f32[2,16,32], index: 1, kind: input, shape index: {}]
  %s2 = inlined_call_operand.hbm [shape: bf16[32,16], index: 2, kind: input, shape index: {}]
  %s3 = inlined_call_operand.hbm [shape: bf16[3,128,768], index: 3, kind: input, shape index: {}]
  %s4 = inlined_call_operand.hbm [shape: bf16[3,32,256], index: 4, kind: input, shape index: {}]
  %s5 = inlined_call_operand.hbm [shape: f32[16,256], index: 5, kind: input, shape index: {}]
  %s6 = inlined_call_operand.hbm [shape: f32[16,32], index: 6, kind: input, shape index: {}]
  %s7 = inlined_call_operand.hbm [shape: f32[16,32], index: 7, kind: input, shape index: {}]
  %s8 = inlined_call_operand.hbm [shape: f32[16,32], index: 8, kind: input, shape index: {}]
  %s9 = inlined_call_operand.hbm [shape: f32[2,16,32], index: 9, kind: output, shape index: {}]
  %s10 = sld [smem:[#allocation0]]
  $region82: #{tpu_custom_call.1} parent=0
    _
  %s12 = ssub.s32 1, %s10
  %s13 = scalar_select 0, %s12, %s10
  $region1: #{tpu_custom_call.1} parent=0
    #allocation2 [shape = 'u8[16384]{0}', space=vmem, size = 0x4000, scoped, tag = 'input window, operand 0, single buffered']
    #allocation3 [shape = 's32[1]{0}', space=sflag, size = 0x4, scoped, tag = 'scoped memory for tpu_custom_call.1']
    #allocation4 [shape = 's32[1]{0}', space=sflag, size = 0x4, scoped, tag = 'scoped memory for tpu_custom_call.1']
    #allocation5 [shape = 'u8[16384]{0}', space=vmem, size = 0x4000, scoped, tag = 'input window, operand 1, single buffered']
    #allocation6 [shape = 's32[1]{0}', space=sflag, size = 0x4, scoped, tag = 'scoped memory for tpu_custom_call.1']
    #allocation7 [shape = 'u8[8192]{0}', space=vmem, size = 0x2000, scoped, tag = 'input window, operand 2, single buffered']
    #allocation8 [shape = 'u8[589824]{0}', space=vmem, size = 0x90000, scoped, tag = 'input window, operand 3, single buffered']
    #allocation9 [shape = 's32[1]{0}', space=sflag, size = 0x4, scoped, tag = 'scoped memory for tpu_custom_call.1']
    #allocation10 [shape = 'u8[49152]{0}', space=vmem, size = 0xc000, scoped, tag = 'input window, operand 4, single buffered']
    #allocation11 [shape = 'u8[16384]{0}', space=vmem, size = 0x4000, scoped, tag = 'input window, operand 5, single buffered']
    #allocation12 [shape = 's32[1]{0}', space=sflag, size = 0x4, scoped, tag = 'scoped memory for tpu_custom_call.1']
    #allocation13 [shape = 'u8[8192]{0}', space=vmem, size = 0x2000, scoped, tag = 'input window, operand 6, single buffered']
    #allocation14 [shape = 'u8[8192]{0}', space=vmem, size = 0x2000, scoped, tag = 'input window, operand 7, single buffered']
    #allocation15 [shape = 's32[1]{0}', space=sflag, size = 0x4, scoped, tag = 'scoped memory for tpu_custom_call.1']
    #allocation16 [shape = 'u8[8192]{0}', space=vmem, size = 0x2000, scoped, tag = 'input window, operand 8, single buffered']
    #allocation17 [shape = 'u8[16384]{0}', space=vmem, size = 0x4000, scoped, tag = 'output window, operand 0, single buffered']
    %14 = vsyncpa [#allocation3], 0
    %15 = vsyncpa [#allocation6], 0
    %16 = vsyncpa [#allocation9], 0
    %17 = vsyncpa [#allocation12], 0
    %18 = vsyncpa [#allocation15], 0
    %19 = vsyncpa [#allocation4], 0
    // Predicated region
    $region2: #{tpu_custom_call.1} parent=1 // pred_check
      _
    $region3: #{tpu_custom_call.1} parent=1 // pred_check_branch
      %21 = sbr.rel (0) target = $region5
    $region4: #{tpu_custom_call.1} parent=1 // pred_region
      %s23 = ssub.s32 512, 512
      %24 = vsyncadd [#allocation3], %s23
      %s25 = sshll.u32 [#allocation2], 4
      %s26 = int_to_ptr.vmem [resolvable:$true] %s25
      %31 = dma.hbm_to_vmem [thread:$0]  %s0, 512, %s26, [#allocation3], 128, 128, 8
    $region5: #{tpu_custom_call.1} parent=1 // pred_fallthru
      _
    // Predicated region
    $region6: #{tpu_custom_call.1} parent=1 // pred_check
      _
    $region7: #{tpu_custom_call.1} parent=1 // pred_check_branch
      %33 = sbr.rel (0) target = $region9
    $region8: #{tpu_custom_call.1} parent=1 // pred_region
      %s35 = ssub.s32 512, 512
      %36 = vsyncadd [#allocation6], %s35
      %s37 = sshll.u32 [#allocation5], 4
      %s38 = int_to_ptr.vmem [resolvable:$true] %s37
      %43 = dma.hbm_to_vmem [thread:$0]  %s1, 512, %s38, [#allocation6], 128, 128, 8
    $region9: #{tpu_custom_call.1} parent=1 // pred_fallthru
      _
    // Predicated region
    $region10: #{tpu_custom_call.1} parent=1 // pred_check
      _
    $region11: #{tpu_custom_call.1} parent=1 // pred_check_branch
      %45 = sbr.rel (0) target = $region13
    $region12: #{tpu_custom_call.1} parent=1 // pred_region
      %s47 = ssub.s32 256, 256
      %48 = vsyncadd [#allocation6], %s47
      %s49 = sshll.u32 [#allocation7], 4
      %s50 = int_to_ptr.vmem [resolvable:$true] %s49
      %55 = dma.hbm_to_vmem [thread:$0]  %s2, 256, %s50, [#allocation6], 64, 64, 4
    $region13: #{tpu_custom_call.1} parent=1 // pred_fallthru
      _
    // Predicated region
    $region14: #{tpu_custom_call.1} parent=1 // pred_check
      _
    $region15: #{tpu_custom_call.1} parent=1 // pred_check_branch
      %57 = sbr.rel (0) target = $region17
    $region16: #{tpu_custom_call.1} parent=1 // pred_region
      %s59 = ssub.s32 18432, 18432
      %60 = vsyncadd [#allocation9], %s59
      %s61 = sshll.u32 [#allocation8], 4
      %s62 = int_to_ptr.vmem [resolvable:$true] %s61
      %67 = dma.hbm_to_vmem [thread:$0]  %s3, 18432, %s62, [#allocation9], 384, 384, 24
    $region17: #{tpu_custom_call.1} parent=1 // pred_fallthru
      _
    // Predicated region
    $region18: #{tpu_custom_call.1} parent=1 // pred_check
      _
    $region19: #{tpu_custom_call.1} parent=1 // pred_check_branch
      %69 = sbr.rel (0) target = $region21
    $region20: #{tpu_custom_call.1} parent=1 // pred_region
      %s71 = ssub.s32 1536, 1536
      %72 = vsyncadd [#allocation9], %s71
      %s73 = sshll.u32 [#allocation10], 4
      %s74 = int_to_ptr.vmem [resolvable:$true] %s73
      %79 = dma.hbm_to_vmem [thread:$0]  %s4, 1536, %s74, [#allocation9], 128, 128, 8
    $region21: #{tpu_custom_call.1} parent=1 // pred_fallthru
      _
    // Predicated region
    $region22: #{tpu_custom_call.1} parent=1 // pred_check
      _
    $region23: #{tpu_custom_call.1} parent=1 // pred_check_branch
      %81 = sbr.rel (0) target = $region25
    $region24: #{tpu_custom_call.1} parent=1 // pred_region
      %s83 = ssub.s32 512, 512
      %84 = vsyncadd [#allocation12], %s83
      %s85 = sshll.u32 [#allocation11], 4
      %s86 = int_to_ptr.vmem [resolvable:$true] %s85
      %91 = dma.hbm_to_vmem [thread:$0]  %s5, 512, %s86, [#allocation12], 256, 256, 16
    $region25: #{tpu_custom_call.1} parent=1 // pred_fallthru
      _
    // Predicated region
    $region26: #{tpu_custom_call.1} parent=1 // pred_check
      _
    $region27: #{tpu_custom_call.1} parent=1 // pred_check_branch
      %93 = sbr.rel (0) target = $region29
    $region28: #{tpu_custom_call.1} parent=1 // pred_region
      %s95 = ssub.s32 256, 256
      %96 = vsyncadd [#allocation12], %s95
      %s97 = sshll.u32 [#allocation13], 4
      %s98 = int_to_ptr.vmem [resolvable:$true] %s97
      %103 = dma.hbm_to_vmem [thread:$0]  %s6, 256, %s98, [#allocation12], 128, 128, 8
    $region29: #{tpu_custom_call.1} parent=1 // pred_fallthru
      _
    // Predicated region
    $region30: #{tpu_custom_call.1} parent=1 // pred_check
      _
    $region31: #{tpu_custom_call.1} parent=1 // pred_check_branch
      %105 = sbr.rel (0) target = $region33
    $region32: #{tpu_custom_call.1} parent=1 // pred_region
      %s107 = ssub.s32 256, 256
      %108 = vsyncadd [#allocation15], %s107
      %s109 = sshll.u32 [#allocation14], 4
      %s110 = int_to_ptr.vmem [resolvable:$true] %s109
      %115 = dma.hbm_to_vmem [thread:$0]  %s7, 256, %s110, [#allocation15], 128, 128, 8
    $region33: #{tpu_custom_call.1} parent=1 // pred_fallthru
      _
    // Predicated region
    $region34: #{tpu_custom_call.1} parent=1 // pred_check
      _
    $region35: #{tpu_custom_call.1} parent=1 // pred_check_branch
      %117 = sbr.rel (0) target = $region37
    $region36: #{tpu_custom_call.1} parent=1 // pred_region
      %s119 = ssub.s32 256, 256
      %120 = vsyncadd [#allocation15], %s119
      %s121 = sshll.u32 [#allocation16], 4
      %s122 = int_to_ptr.vmem [resolvable:$true] %s121
      %127 = dma.hbm_to_vmem [thread:$0]  %s8, 256, %s122, [#allocation15], 128, 128, 8
    $region37: #{tpu_custom_call.1} parent=1 // pred_fallthru
      _
    // Predicated region
    $region38: #{tpu_custom_call.1} parent=1 // pred_check
      _
    $region39: #{tpu_custom_call.1} parent=1 // pred_check_branch
      %129 = sbr.rel (0) target = $region41
    $region40: #{tpu_custom_call.1} parent=1 // pred_region
      %130 = dma.done [#allocation3], 512
    $region41: #{tpu_custom_call.1} parent=1 // pred_fallthru
      _
    // Predicated region
    $region42: #{tpu_custom_call.1} parent=1 // pred_check
      _
    $region43: #{tpu_custom_call.1} parent=1 // pred_check_branch
      %132 = sbr.rel (0) target = $region45
    $region44: #{tpu_custom_call.1} parent=1 // pred_region
      %133 = dma.done [#allocation6], 512
    $region45: #{tpu_custom_call.1} parent=1 // pred_fallthru
      _
    // Predicated region
    $region46: #{tpu_custom_call.1} parent=1 // pred_check
      _
    $region47: #{tpu_custom_call.1} parent=1 // pred_check_branch
      %135 = sbr.rel (0) target = $region49
    $region48: #{tpu_custom_call.1} parent=1 // pred_region
      %136 = dma.done [#allocation6], 256
    $region49: #{tpu_custom_call.1} parent=1 // pred_fallthru
      _
    // Predicated region
    $region50: #{tpu_custom_call.1} parent=1 // pred_check
      _
    $region51: #{tpu_custom_call.1} parent=1 // pred_check_branch
      %138 = sbr.rel (0) target = $region53
    $region52: #{tpu_custom_call.1} parent=1 // pred_region
      %139 = dma.done [#allocation9], 18432
    $region53: #{tpu_custom_call.1} parent=1 // pred_fallthru
      _
    // Predicated region
    $region54: #{tpu_custom_call.1} parent=1 // pred_check
      _
    $region55: #{tpu_custom_call.1} parent=1 // pred_check_branch
      %141 = sbr.rel (0) target = $region57
    $region56: #{tpu_custom_call.1} parent=1 // pred_region
      %142 = dma.done [#allocation9], 1536
    $region57: #{tpu_custom_call.1} parent=1 // pred_fallthru
      _
    // Predicated region
    $region58: #{tpu_custom_call.1} parent=1 // pred_check
      _
    $region59: #{tpu_custom_call.1} parent=1 // pred_check_branch
      %144 = sbr.rel (0) target = $region61
    $region60: #{tpu_custom_call.1} parent=1 // pred_region
      %145 = dma.done [#allocation12], 512
    $region61: #{tpu_custom_call.1} parent=1 // pred_fallthru
      _
    // Predicated region
    $region62: #{tpu_custom_call.1} parent=1 // pred_check
      _
    $region63: #{tpu_custom_call.1} parent=1 // pred_check_branch
      %147 = sbr.rel (0) target = $region65
    $region64: #{tpu_custom_call.1} parent=1 // pred_region
      %148 = dma.done [#allocation12], 256
    $region65: #{tpu_custom_call.1} parent=1 // pred_fallthru
      _
    // Predicated region
    $region66: #{tpu_custom_call.1} parent=1 // pred_check
      _
    $region67: #{tpu_custom_call.1} parent=1 // pred_check_branch
      %150 = sbr.rel (0) target = $region69
    $region68: #{tpu_custom_call.1} parent=1 // pred_region
      %151 = dma.done [#allocation15], 256
    $region69: #{tpu_custom_call.1} parent=1 // pred_fallthru
      _
    // Predicated region
    $region70: #{tpu_custom_call.1} parent=1 // pred_check
      _
    $region71: #{tpu_custom_call.1} parent=1 // pred_check_branch
      %153 = sbr.rel (0) target = $region73
    $region72: #{tpu_custom_call.1} parent=1 // pred_region
      %154 = dma.done [#allocation15], 256
    $region73: #{tpu_custom_call.1} parent=1 // pred_fallthru
      _
    %v156 = vld [vmem:[#allocation5] sm:$0xff]
    %v157 = vld [vmem:[#allocation5 + $0x8] sm:$0xff]
    %v158 = vld [vmem:[#allocation5 + $0x10] sm:$0xff]
    %v159 = vld [vmem:[#allocation5 + $0x18] sm:$0xff]
    %v160 = vld [vmem:[#allocation2] sm:$0xff]
    %v161 = vld [vmem:[#allocation2 + $0x8] sm:$0xff]
    %v162 = vld [vmem:[#allocation2 + $0x10] sm:$0xff]
    %v163 = vld [vmem:[#allocation2 + $0x18] sm:$0xff]
    %v164 = vpack.c.bf16 %v161, %v160
    %v165 = vpack.c.bf16 %v163, %v162
    %v166 = vld [vmem:[#allocation7] sm:$0xf]
    %v167 = vld [vmem:[#allocation7 + $0x4] sm:$0xf]
    %v168 = vld [vmem:[#allocation7 + $0x8] sm:$0xf]
    %v169 = vld [vmem:[#allocation7 + $0xc] sm:$0xf]
    %v170 = vld [vmem:[#allocation11] sm:$0xff]
    %v171 = vld [vmem:[#allocation11 + $0x8] sm:$0xff]
    %v172 = vld [vmem:[#allocation11 + $0x10] sm:$0xff]
    %v173 = vld [vmem:[#allocation11 + $0x18] sm:$0xff]
    %v178 = vunpack.c.l.b16 %v166
    %v179 = vunpack.c.l.b16 %v167
    %v180 = vunpack.c.l.b16 %v168
    %v181 = vunpack.c.l.b16 %v169
    %v182 = vpack.c.b16 %v179, %v178
    %v183 = vpack.c.b16 %v181, %v180
    %vm184 = vcmask 130048
    %v186 = vsel %vm184, %v182, 0
    %v189 = vsel %vm184, %v183, 0
    %191 = vmatprep.subr.bf16.mxu0 0
    %192 = vmatpush1.bf16.msra.mxu0 %v164
    %193 = vmatprep.subr.bf16.mxu0 0
    %194 = vmatpush1.bf16.msra.mxu0 0
    %195 = vmatprep.subr.bf16.mxu0 0
    %196 = vmatpush1.bf16.msra.mxu0 0
    %197 = vmatprep.subr.bf16.mxu0 0
    %198 = vmatpush1.bf16.msra.mxu0 0
    %199 = vmatprep.subr.bf16.mxu0 0
    %200 = vmatpush1.bf16.msra.mxu0 0
    %201 = vmatprep.subr.bf16.mxu0 0
    %202 = vmatpush1.bf16.msra.mxu0 0
    %203 = vmatprep.subr.bf16.mxu0 0
    %204 = vmatpush1.bf16.msra.mxu0 0
    %205 = vmatprep.subr.bf16.mxu0 0
    %206 = vmatpush1.bf16.msra.mxu0 0
    %207 = vmatprep.subr.bf16.mxu0 0
    %208 = vmatpush1.bf16.msra.mxu0 0
    %209 = vmatprep.subr.bf16.mxu0 0
    %210 = vmatpush1.bf16.msra.mxu0 0
    %211 = vmatprep.subr.bf16.mxu0 0
    %212 = vmatpush1.bf16.msra.mxu0 0
    %213 = vmatprep.subr.bf16.mxu0 0
    %214 = vmatpush1.bf16.msra.mxu0 0
    %215 = vmatprep.subr.bf16.mxu0 0
    %216 = vmatpush1.bf16.msra.mxu0 0
    %217 = vmatprep.subr.bf16.mxu0 0
    %218 = vmatpush1.bf16.msra.mxu0 0
    %219 = vmatprep.subr.bf16.mxu0 0
    %220 = vmatpush1.bf16.msra.mxu0 0
    %221 = vmatprep.subr.bf16.mxu0 0
    %222 = vmatpush1.bf16.msra.mxu0 0
    %223 = vmatprep.mubr.bf16.mxu0 0
    %224 = vmatmul.mubr.bf16.gmra.mrb[0].mxu0 %v186
    %v225 = vpop.f32.mrb[0].mxu0
    %v226 = vadd.f32 0.0, %v225
    %v227 = vpop.f32.mrb[0].mxu0
    %v228 = vpop.f32.mrb[0].mxu0
    %v229 = vadd.f32 0.0, %v228
    %v230 = vpop.f32.mrb[0].mxu0
    %231 = vmatprep.mubr.bf16.mxu0 0
    %232 = vmatmul.mubr.bf16.gmra.mrb[0].mxu0 %v189
    %v233 = vpop.f32.mrb[0].mxu0
    %v234 = vadd.f32 0.0, %v233
    %v235 = vpop.f32.mrb[0].mxu0
    %v236 = vpop.f32.mrb[0].mxu0
    %v237 = vadd.f32 0.0, %v236
    %v238 = vpop.f32.mrb[0].mxu0
    %239 = vdwg.mxu0
    %240 = vmatprep.subr.bf16.mxu0 0
    %241 = vmatpush1.bf16.msra.mxu0 %v165
    %242 = vmatprep.subr.bf16.mxu0 0
    %243 = vmatpush1.bf16.msra.mxu0 0
    %244 = vmatprep.subr.bf16.mxu0 0
    %245 = vmatpush1.bf16.msra.mxu0 0
    %246 = vmatprep.subr.bf16.mxu0 0
    %247 = vmatpush1.bf16.msra.mxu0 0
    %248 = vmatprep.subr.bf16.mxu0 0
    %249 = vmatpush1.bf16.msra.mxu0 0
    %250 = vmatprep.subr.bf16.mxu0 0
    %251 = vmatpush1.bf16.msra.mxu0 0
    %252 = vmatprep.subr.bf16.mxu0 0
    %253 = vmatpush1.bf16.msra.mxu0 0
    %254 = vmatprep.subr.bf16.mxu0 0
    %255 = vmatpush1.bf16.msra.mxu0 0
    %256 = vmatprep.subr.bf16.mxu0 0
    %257 = vmatpush1.bf16.msra.mxu0 0
    %258 = vmatprep.subr.bf16.mxu0 0
    %259 = vmatpush1.bf16.msra.mxu0 0
    %260 = vmatprep.subr.bf16.mxu0 0
    %261 = vmatpush1.bf16.msra.mxu0 0
    %262 = vmatprep.subr.bf16.mxu0 0
    %263 = vmatpush1.bf16.msra.mxu0 0
    %264 = vmatprep.subr.bf16.mxu0 0
    %265 = vmatpush1.bf16.msra.mxu0 0
    %266 = vmatprep.subr.bf16.mxu0 0
    %267 = vmatpush1.bf16.msra.mxu0 0
    %268 = vmatprep.subr.bf16.mxu0 0
    %269 = vmatpush1.bf16.msra.mxu0 0
    %270 = vmatprep.subr.bf16.mxu0 0
    %271 = vmatpush1.bf16.msra.mxu0 0
    %272 = vmatprep.mubr.bf16.mxu0 0
    %273 = vmatmul.mubr.bf16.gmra.mrb[0].mxu0 %v186
    %v274 = vpop.f32.mrb[0].mxu0
    %v275 = vadd.f32 0.0, %v274
    %v276 = vpop.f32.mrb[0].mxu0
    %v277 = vpop.f32.mrb[0].mxu0
    %v278 = vadd.f32 0.0, %v277
    %v279 = vpop.f32.mrb[0].mxu0
    %280 = vmatprep.mubr.bf16.mxu0 0
    %281 = vmatmul.mubr.bf16.gmra.mrb[0].mxu0 %v189
    %v282 = vpop.f32.mrb[0].mxu0
    %v283 = vadd.f32 0.0, %v282
    %v284 = vpop.f32.mrb[0].mxu0
    %v285 = vpop.f32.mrb[0].mxu0
    %v286 = vadd.f32 0.0, %v285
    %v287 = vpop.f32.mrb[0].mxu0
    %288 = vdwg.mxu0
    %v289 = vpack.c.bf16 %v229, %v226
    %v290 = vpack.c.bf16 %v278, %v275
    %v291 = vpack.c.bf16 %v237, %v234
    %v292 = vpack.c.bf16 %v286, %v283
    %v293 = vld [vmem:[#allocation8] sm:$0xff]
    %v294 = vld [vmem:[#allocation8 + $0x8] sm:$0xff]
    %v295 = vld [vmem:[#allocation8 + $0x10] sm:$0xff]
    %v296 = vld [vmem:[#allocation8 + $0x18] sm:$0xff]
    %v297 = vld [vmem:[#allocation8 + $0x20] sm:$0xff]
    %v298 = vld [vmem:[#allocation8 + $0x28] sm:$0xff]
    %v299 = vld [vmem:[#allocation8 + $0x30] sm:$0xff]
    %v300 = vld [vmem:[#allocation8 + $0x38] sm:$0xff]
    %v301 = vld [vmem:[#allocation8 + $0x40] sm:$0xff]
    %v302 = vld [vmem:[#allocation8 + $0x48] sm:$0xff]
    %v303 = vld [vmem:[#allocation8 + $0x50] sm:$0xff]
    %v304 = vld [vmem:[#allocation8 + $0x58] sm:$0xff]
    %v305 = vld [vmem:[#allocation8 + $0x60] sm:$0xff]
    %v306 = vld [vmem:[#allocation8 + $0x68] sm:$0xff]
    %v307 = vld [vmem:[#allocation8 + $0x70] sm:$0xff]
    %v308 = vld [vmem:[#allocation8 + $0x78] sm:$0xff]
    %v309 = vld [vmem:[#allocation8 + $0x80] sm:$0xff]
    %v310 = vld [vmem:[#allocation8 + $0x88] sm:$0xff]
    %v311 = vld [vmem:[#allocation8 + $0x90] sm:$0xff]
    %v312 = vld [vmem:[#allocation8 + $0x98] sm:$0xff]
    %v313 = vld [vmem:[#allocation8 + $0xa0] sm:$0xff]
    %v314 = vld [vmem:[#allocation8 + $0xa8] sm:$0xff]
    %v315 = vld [vmem:[#allocation8 + $0xb0] sm:$0xff]
    %v316 = vld [vmem:[#allocation8 + $0xb8] sm:$0xff]
    %v317 = vld [vmem:[#allocation8 + $0xc0] sm:$0xff]
    %v318 = vld [vmem:[#allocation8 + $0xc8] sm:$0xff]
    %v319 = vld [vmem:[#allocation8 + $0xd0] sm:$0xff]
    %v320 = vld [vmem:[#allocation8 + $0xd8] sm:$0xff]
    %v321 = vld [vmem:[#allocation8 + $0xe0] sm:$0xff]
    %v322 = vld [vmem:[#allocation8 + $0xe8] sm:$0xff]
    %v323 = vld [vmem:[#allocation8 + $0xf0] sm:$0xff]
    %v324 = vld [vmem:[#allocation8 + $0xf8] sm:$0xff]
    %v325 = vld [vmem:[#allocation8 + $0x100] sm:$0xff]
    %v326 = vld [vmem:[#allocation8 + $0x108] sm:$0xff]
    %v327 = vld [vmem:[#allocation8 + $0x110] sm:$0xff]
    %v328 = vld [vmem:[#allocation8 + $0x118] sm:$0xff]
    %v329 = vld [vmem:[#allocation8 + $0x120] sm:$0xff]
    %v330 = vld [vmem:[#allocation8 + $0x128] sm:$0xff]
    %v331 = vld [vmem:[#allocation8 + $0x130] sm:$0xff]
    %v332 = vld [vmem:[#allocation8 + $0x138] sm:$0xff]
    %v333 = vld [vmem:[#allocation8 + $0x140] sm:$0xff]
    %v334 = vld [vmem:[#allocation8 + $0x148] sm:$0xff]
    %v335 = vld [vmem:[#allocation8 + $0x150] sm:$0xff]
    %v336 = vld [vmem:[#allocation8 + $0x158] sm:$0xff]
    %v337 = vld [vmem:[#allocation8 + $0x160] sm:$0xff]
    %v338 = vld [vmem:[#allocation8 + $0x168] sm:$0xff]
    %v339 = vld [vmem:[#allocation8 + $0x170] sm:$0xff]
    %v340 = vld [vmem:[#allocation8 + $0x178] sm:$0xff]
    %s341 = scalar_lea.vmem [#allocation8], 384
    %v342 = vld [vmem:[%s341] sm:$0xff]
    %v343 = vld [vmem:[%s341 + $0x8] sm:$0xff]
    %v344 = vld [vmem:[%s341 + $0x10] sm:$0xff]
    %v345 = vld [vmem:[%s341 + $0x18] sm:$0xff]
    %v346 = vld [vmem:[%s341 + $0x20] sm:$0xff]
    %v347 = vld [vmem:[%s341 + $0x28] sm:$0xff]
    %v348 = vld [vmem:[%s341 + $0x30] sm:$0xff]
    %v349 = vld [vmem:[%s341 + $0x38] sm:$0xff]
    %v350 = vld [vmem:[%s341 + $0x40] sm:$0xff]
    %v351 = vld [vmem:[%s341 + $0x48] sm:$0xff]
    %v352 = vld [vmem:[%s341 + $0x50] sm:$0xff]
    %v353 = vld [vmem:[%s341 + $0x58] sm:$0xff]
    %v354 = vld [vmem:[%s341 + $0x60] sm:$0xff]
    %v355 = vld [vmem:[%s341 + $0x68] sm:$0xff]
    %v356 = vld [vmem:[%s341 + $0x70] sm:$0xff]
    %v357 = vld [vmem:[%s341 + $0x78] sm:$0xff]
    %v358 = vld [vmem:[%s341 + $0x80] sm:$0xff]
    %v359 = vld [vmem:[%s341 + $0x88] sm:$0xff]
    %v360 = vld [vmem:[%s341 + $0x90] sm:$0xff]
    %v361 = vld [vmem:[%s341 + $0x98] sm:$0xff]
    %v362 = vld [vmem:[%s341 + $0xa0] sm:$0xff]
    %v363 = vld [vmem:[%s341 + $0xa8] sm:$0xff]
    %v364 = vld [vmem:[%s341 + $0xb0] sm:$0xff]
    %v365 = vld [vmem:[%s341 + $0xb8] sm:$0xff]
    %v366 = vld [vmem:[%s341 + $0xc0] sm:$0xff]
    %v367 = vld [vmem:[%s341 + $0xc8] sm:$0xff]
    %v368 = vld [vmem:[%s341 + $0xd0] sm:$0xff]
    %v369 = vld [vmem:[%s341 + $0xd8] sm:$0xff]
    %v370 = vld [vmem:[%s341 + $0xe0] sm:$0xff]
    %v371 = vld [vmem:[%s341 + $0xe8] sm:$0xff]
    %v372 = vld [vmem:[%s341 + $0xf0] sm:$0xff]
    %v373 = vld [vmem:[%s341 + $0xf8] sm:$0xff]
    %v374 = vld [vmem:[%s341 + $0x100] sm:$0xff]
    %v375 = vld [vmem:[%s341 + $0x108] sm:$0xff]
    %v376 = vld [vmem:[%s341 + $0x110] sm:$0xff]
    %v377 = vld [vmem:[%s341 + $0x118] sm:$0xff]
    %v378 = vld [vmem:[%s341 + $0x120] sm:$0xff]
    %v379 = vld [vmem:[%s341 + $0x128] sm:$0xff]
    %v380 = vld [vmem:[%s341 + $0x130] sm:$0xff]
    %v381 = vld [vmem:[%s341 + $0x138] sm:$0xff]
    %v382 = vld [vmem:[%s341 + $0x140] sm:$0xff]
    %v383 = vld [vmem:[%s341 + $0x148] sm:$0xff]
    %v384 = vld [vmem:[%s341 + $0x150] sm:$0xff]
    %v385 = vld [vmem:[%s341 + $0x158] sm:$0xff]
    %v386 = vld [vmem:[%s341 + $0x160] sm:$0xff]
    %v387 = vld [vmem:[%s341 + $0x168] sm:$0xff]
    %v388 = vld [vmem:[%s341 + $0x170] sm:$0xff]
    %v389 = vld [vmem:[%s341 + $0x178] sm:$0xff]
    %v438 = vunpack.c.l.b16 %v342
    %v439 = vunpack.c.h.b16 %v342
    %v440 = vunpack.c.l.b16 %v343
    %v441 = vunpack.c.h.b16 %v343
    %v442 = vunpack.c.l.b16 %v344
    %v443 = vunpack.c.h.b16 %v344
    %v444 = vunpack.c.l.b16 %v345
    %v445 = vunpack.c.h.b16 %v345
    %v446 = vunpack.c.l.b16 %v346
    %v447 = vunpack.c.h.b16 %v346
    %v448 = vunpack.c.l.b16 %v347
    %v449 = vunpack.c.h.b16 %v347
    %v450 = vunpack.c.l.b16 %v348
    %v451 = vunpack.c.h.b16 %v348
    %v452 = vunpack.c.l.b16 %v349
    %v453 = vunpack.c.h.b16 %v349
    %v454 = vunpack.c.l.b16 %v350
    %v455 = vunpack.c.h.b16 %v350
    %v456 = vunpack.c.l.b16 %v351
    %v457 = vunpack.c.h.b16 %v351
    %v458 = vunpack.c.l.b16 %v352
    %v459 = vunpack.c.h.b16 %v352
    %v460 = vunpack.c.l.b16 %v353
    %v461 = vunpack.c.h.b16 %v353
    %v462 = vunpack.c.l.b16 %v354
    %v463 = vunpack.c.h.b16 %v354
    %v464 = vunpack.c.l.b16 %v355
    %v465 = vunpack.c.h.b16 %v355
    %v466 = vunpack.c.l.b16 %v356
    %v467 = vunpack.c.h.b16 %v356
    %v468 = vunpack.c.l.b16 %v357
    %v469 = vunpack.c.h.b16 %v357
    %v470 = vunpack.c.l.b16 %v358
    %v471 = vunpack.c.h.b16 %v358
    %v472 = vunpack.c.l.b16 %v359
    %v473 = vunpack.c.h.b16 %v359
    %v474 = vunpack.c.l.b16 %v360
    %v475 = vunpack.c.h.b16 %v360
    %v476 = vunpack.c.l.b16 %v361
    %v477 = vunpack.c.h.b16 %v361
    %v478 = vunpack.c.l.b16 %v362
    %v479 = vunpack.c.h.b16 %v362
    %v480 = vunpack.c.l.b16 %v363
    %v481 = vunpack.c.h.b16 %v363
    %v482 = vunpack.c.l.b16 %v364
    %v483 = vunpack.c.h.b16 %v364
    %v484 = vunpack.c.l.b16 %v365
    %v485 = vunpack.c.h.b16 %v365
    %v486 = vunpack.c.l.b16 %v366
    %v487 = vunpack.c.h.b16 %v366
    %v488 = vunpack.c.l.b16 %v367
    %v489 = vunpack.c.h.b16 %v367
    %v490 = vunpack.c.l.b16 %v368
    %v491 = vunpack.c.h.b16 %v368
    %v492 = vunpack.c.l.b16 %v369
    %v493 = vunpack.c.h.b16 %v369
    %v494 = vunpack.c.l.b16 %v370
    %v495 = vunpack.c.h.b16 %v370
    %v496 = vunpack.c.l.b16 %v371
    %v497 = vunpack.c.h.b16 %v371
    %v498 = vunpack.c.l.b16 %v372
    %v499 = vunpack.c.h.b16 %v372
    %v500 = vunpack.c.l.b16 %v373
    %v501 = vunpack.c.h.b16 %v373
    %v502 = vunpack.c.l.b16 %v374
    %v503 = vunpack.c.h.b16 %v374
    %v504 = vunpack.c.l.b16 %v375
    %v505 = vunpack.c.h.b16 %v375
    %v506 = vunpack.c.l.b16 %v376
    %v507 = vunpack.c.h.b16 %v376
    %v508 = vunpack.c.l.b16 %v377
    %v509 = vunpack.c.h.b16 %v377
    %v510 = vunpack.c.l.b16 %v378
    %v511 = vunpack.c.h.b16 %v378
    %v512 = vunpack.c.l.b16 %v379
    %v513 = vunpack.c.h.b16 %v379
    %v514 = vunpack.c.l.b16 %v380
    %v515 = vunpack.c.h.b16 %v380
    %v516 = vunpack.c.l.b16 %v381
    %v517 = vunpack.c.h.b16 %v381
    %v518 = vunpack.c.l.b16 %v382
    %v519 = vunpack.c.h.b16 %v382
    %v520 = vunpack.c.l.b16 %v383
    %v521 = vunpack.c.h.b16 %v383
    %v522 = vunpack.c.l.b16 %v384
    %v523 = vunpack.c.h.b16 %v384
    %v524 = vunpack.c.l.b16 %v385
    %v525 = vunpack.c.h.b16 %v385
    %v526 = vunpack.c.l.b16 %v386
    %v527 = vunpack.c.h.b16 %v386
    %v528 = vunpack.c.l.b16 %v387
    %v529 = vunpack.c.h.b16 %v387
    %v530 = vunpack.c.l.b16 %v388
    %v531 = vunpack.c.h.b16 %v388
    %v532 = vunpack.c.l.b16 %v389
    %v533 = vunpack.c.h.b16 %v389
    %v534 = vpack.c.b16 %v444, %v438
    %v535 = vpack.c.b16 %v445, %v439
    %v536 = vpack.c.b16 %v446, %v440
    %v537 = vpack.c.b16 %v447, %v441
    %v538 = vpack.c.b16 %v448, %v442
    %v539 = vpack.c.b16 %v449, %v443
    %v540 = vpack.c.b16 %v456, %v450
    %v541 = vpack.c.b16 %v457, %v451
    %v542 = vpack.c.b16 %v458, %v452
    %v543 = vpack.c.b16 %v459, %v453
    %v544 = vpack.c.b16 %v460, %v454
    %v545 = vpack.c.b16 %v461, %v455
    %v546 = vpack.c.b16 %v468, %v462
    %v547 = vpack.c.b16 %v469, %v463
    %v548 = vpack.c.b16 %v470, %v464
    %v549 = vpack.c.b16 %v471, %v465
    %v550 = vpack.c.b16 %v472, %v466
    %v551 = vpack.c.b16 %v473, %v467
    %v552 = vpack.c.b16 %v480, %v474
    %v553 = vpack.c.b16 %v481, %v475
    %v554 = vpack.c.b16 %v482, %v476
    %v555 = vpack.c.b16 %v483, %v477
    %v556 = vpack.c.b16 %v484, %v478
    %v557 = vpack.c.b16 %v485, %v479
    %v558 = vpack.c.b16 %v492, %v486
    %v559 = vpack.c.b16 %v493, %v487
    %v560 = vpack.c.b16 %v494, %v488
    %v561 = vpack.c.b16 %v495, %v489
    %v562 = vpack.c.b16 %v496, %v490
    %v563 = vpack.c.b16 %v497, %v491
    %v564 = vpack.c.b16 %v504, %v498
    %v565 = vpack.c.b16 %v505, %v499
    %v566 = vpack.c.b16 %v506, %v500
    %v567 = vpack.c.b16 %v507, %v501
    %v568 = vpack.c.b16 %v508, %v502
    %v569 = vpack.c.b16 %v509, %v503
    %v570 = vpack.c.b16 %v516, %v510
    %v571 = vpack.c.b16 %v517, %v511
    %v572 = vpack.c.b16 %v518, %v512
    %v573 = vpack.c.b16 %v519, %v513
    %v574 = vpack.c.b16 %v520, %v514
    %v575 = vpack.c.b16 %v521, %v515
    %v576 = vpack.c.b16 %v528, %v522
    %v577 = vpack.c.b16 %v529, %v523
    %v578 = vpack.c.b16 %v530, %v524
    %v579 = vpack.c.b16 %v531, %v525
    %v580 = vpack.c.b16 %v532, %v526
    %v581 = vpack.c.b16 %v533, %v527
    %630 = vmatprep.subr.bf16.mxu0 %v535
    %631 = vmatpush1.bf16.msra.mxu0 %v534
    %632 = vmatprep.subr.bf16.mxu0 %v541
    %633 = vmatpush1.bf16.msra.mxu0 %v540
    %634 = vmatprep.subr.bf16.mxu0 %v547
    %635 = vmatpush1.bf16.msra.mxu0 %v546
    %636 = vmatprep.subr.bf16.mxu0 %v553
    %637 = vmatpush1.bf16.msra.mxu0 %v552
    %638 = vmatprep.subr.bf16.mxu0 %v559
    %639 = vmatpush1.bf16.msra.mxu0 %v558
    %640 = vmatprep.subr.bf16.mxu0 %v565
    %641 = vmatpush1.bf16.msra.mxu0 %v564
    %642 = vmatprep.subr.bf16.mxu0 %v571
    %643 = vmatpush1.bf16.msra.mxu0 %v570
    %644 = vmatprep.subr.bf16.mxu0 %v577
    %645 = vmatpush1.bf16.msra.mxu0 %v576
    %646 = vmatprep.subr.bf16.mxu0 0
    %647 = vmatpush1.bf16.msra.mxu0 0
    %648 = vmatprep.subr.bf16.mxu0 0
    %649 = vmatpush1.bf16.msra.mxu0 0
    %650 = vmatprep.subr.bf16.mxu0 0
    %651 = vmatpush1.bf16.msra.mxu0 0
    %652 = vmatprep.subr.bf16.mxu0 0
    %653 = vmatpush1.bf16.msra.mxu0 0
    %654 = vmatprep.subr.bf16.mxu0 0
    %655 = vmatpush1.bf16.msra.mxu0 0
    %656 = vmatprep.subr.bf16.mxu0 0
    %657 = vmatpush1.bf16.msra.mxu0 0
    %658 = vmatprep.subr.bf16.mxu0 0
    %659 = vmatpush1.bf16.msra.mxu0 0
    %660 = vmatprep.subr.bf16.mxu0 0
    %661 = vmatpush1.bf16.msra.mxu0 0
    %662 = vmatprep.mubr.bf16.mxu0 0
    %663 = vmatmul.mubr.bf16.gmra.mrb[0].mxu0 %v289
    %v664 = vpop.f32.mrb[0].mxu0
    %v665 = vadd.f32 0.0, %v664
    %v666 = vpop.f32.mrb[0].mxu0
    %v667 = vadd.f32 0.0, %v666
    %v668 = vpop.f32.mrb[0].mxu0
    %v669 = vadd.f32 0.0, %v668
    %v670 = vpop.f32.mrb[0].mxu0
    %v671 = vadd.f32 0.0, %v670
    %672 = vmatprep.mubr.bf16.mxu0 0
    %673 = vmatmul.mubr.bf16.gmra.mrb[0].mxu0 %v290
    %v674 = vpop.f32.mrb[0].mxu0
    %v675 = vadd.f32 0.0, %v674
    %v676 = vpop.f32.mrb[0].mxu0
    %v677 = vadd.f32 0.0, %v676
    %v678 = vpop.f32.mrb[0].mxu0
    %v679 = vadd.f32 0.0, %v678
    %v680 = vpop.f32.mrb[0].mxu0
    %v681 = vadd.f32 0.0, %v680
    %682 = vdwg.mxu0
    %683 = vmatprep.subr.bf16.mxu0 %v537
    %684 = vmatpush1.bf16.msra.mxu0 %v536
    %685 = vmatprep.subr.bf16.mxu0 %v543
    %686 = vmatpush1.bf16.msra.mxu0 %v542
    %687 = vmatprep.subr.bf16.mxu0 %v549
    %688 = vmatpush1.bf16.msra.mxu0 %v548
    %689 = vmatprep.subr.bf16.mxu0 %v555
    %690 = vmatpush1.bf16.msra.mxu0 %v554
    %691 = vmatprep.subr.bf16.mxu0 %v561
    %692 = vmatpush1.bf16.msra.mxu0 %v560
    %693 = vmatprep.subr.bf16.mxu0 %v567
    %694 = vmatpush1.bf16.msra.mxu0 %v566
    %695 = vmatprep.subr.bf16.mxu0 %v573
    %696 = vmatpush1.bf16.msra.mxu0 %v572
    %697 = vmatprep.subr.bf16.mxu0 %v579
    %698 = vmatpush1.bf16.msra.mxu0 %v578
    %699 = vmatprep.subr.bf16.mxu0 0
    %700 = vmatpush1.bf16.msra.mxu0 0
    %701 = vmatprep.subr.bf16.mxu0 0
    %702 = vmatpush1.bf16.msra.mxu0 0
    %703 = vmatprep.subr.bf16.mxu0 0
    %704 = vmatpush1.bf16.msra.mxu0 0
    %705 = vmatprep.subr.bf16.mxu0 0
    %706 = vmatpush1.bf16.msra.mxu0 0
    %707 = vmatprep.subr.bf16.mxu0 0
    %708 = vmatpush1.bf16.msra.mxu0 0
    %709 = vmatprep.subr.bf16.mxu0 0
    %710 = vmatpush1.bf16.msra.mxu0 0
    %711 = vmatprep.subr.bf16.mxu0 0
    %712 = vmatpush1.bf16.msra.mxu0 0
    %713 = vmatprep.subr.bf16.mxu0 0
    %714 = vmatpush1.bf16.msra.mxu0 0
    %715 = vmatprep.mubr.bf16.mxu0 0
    %716 = vmatmul.mubr.bf16.gmra.mrb[0].mxu0 %v289
    %v717 = vpop.f32.mrb[0].mxu0
    %v718 = vadd.f32 0.0, %v717
    %v719 = vpop.f32.mrb[0].mxu0
    %v720 = vadd.f32 0.0, %v719
    %v721 = vpop.f32.mrb[0].mxu0
    %v722 = vadd.f32 0.0, %v721
    %v723 = vpop.f32.mrb[0].mxu0
    %v724 = vadd.f32 0.0, %v723
    %725 = vmatprep.mubr.bf16.mxu0 0
    %726 = vmatmul.mubr.bf16.gmra.mrb[0].mxu0 %v290
    %v727 = vpop.f32.mrb[0].mxu0
    %v728 = vadd.f32 0.0, %v727
    %v729 = vpop.f32.mrb[0].mxu0
    %v730 = vadd.f32 0.0, %v729
    %v731 = vpop.f32.mrb[0].mxu0
    %v732 = vadd.f32 0.0, %v731
    %v733 = vpop.f32.mrb[0].mxu0
    %v734 = vadd.f32 0.0, %v733
    %735 = vdwg.mxu0
    %736 = vmatprep.subr.bf16.mxu0 %v539
    %737 = vmatpush1.bf16.msra.mxu0 %v538
    %738 = vmatprep.subr.bf16.mxu0 %v545
    %739 = vmatpush1.bf16.msra.mxu0 %v544
    %740 = vmatprep.subr.bf16.mxu0 %v551
    %741 = vmatpush1.bf16.msra.mxu0 %v550
    %742 = vmatprep.subr.bf16.mxu0 %v557
    %743 = vmatpush1.bf16.msra.mxu0 %v556
    %744 = vmatprep.subr.bf16.mxu0 %v563
    %745 = vmatpush1.bf16.msra.mxu0 %v562
    %746 = vmatprep.subr.bf16.mxu0 %v569
    %747 = vmatpush1.bf16.msra.mxu0 %v568
    %748 = vmatprep.subr.bf16.mxu0 %v575
    %749 = vmatpush1.bf16.msra.mxu0 %v574
    %750 = vmatprep.subr.bf16.mxu0 %v581
    %751 = vmatpush1.bf16.msra.mxu0 %v580
    %752 = vmatprep.subr.bf16.mxu0 0
    %753 = vmatpush1.bf16.msra.mxu0 0
    %754 = vmatprep.subr.bf16.mxu0 0
    %755 = vmatpush1.bf16.msra.mxu0 0
    %756 = vmatprep.subr.bf16.mxu0 0
    %757 = vmatpush1.bf16.msra.mxu0 0
    %758 = vmatprep.subr.bf16.mxu0 0
    %759 = vmatpush1.bf16.msra.mxu0 0
    %760 = vmatprep.subr.bf16.mxu0 0
    %761 = vmatpush1.bf16.msra.mxu0 0
    %762 = vmatprep.subr.bf16.mxu0 0
    %763 = vmatpush1.bf16.msra.mxu0 0
    %764 = vmatprep.subr.bf16.mxu0 0
    %765 = vmatpush1.bf16.msra.mxu0 0
    %766 = vmatprep.subr.bf16.mxu0 0
    %767 = vmatpush1.bf16.msra.mxu0 0
    %768 = vmatprep.mubr.bf16.mxu0 0
    %769 = vmatmul.mubr.bf16.gmra.mrb[0].mxu0 %v289
    %v770 = vpop.f32.mrb[0].mxu0
    %v771 = vadd.f32 0.0, %v770
    %v772 = vpop.f32.mrb[0].mxu0
    %v773 = vadd.f32 0.0, %v772
    %v774 = vpop.f32.mrb[0].mxu0
    %v775 = vadd.f32 0.0, %v774
    %v776 = vpop.f32.mrb[0].mxu0
    %v777 = vadd.f32 0.0, %v776
    %778 = vmatprep.mubr.bf16.mxu0 0
    %779 = vmatmul.mubr.bf16.gmra.mrb[0].mxu0 %v290
    %v780 = vpop.f32.mrb[0].mxu0
    %v781 = vadd.f32 0.0, %v780
    %v782 = vpop.f32.mrb[0].mxu0
    %v783 = vadd.f32 0.0, %v782
    %v784 = vpop.f32.mrb[0].mxu0
    %v785 = vadd.f32 0.0, %v784
    %v786 = vpop.f32.mrb[0].mxu0
    %v787 = vadd.f32 0.0, %v786
    %788 = vdwg.mxu0
    %v837 = vunpack.c.l.b16 %v293
    %v838 = vunpack.c.h.b16 %v293
    %v839 = vunpack.c.l.b16 %v294
    %v840 = vunpack.c.h.b16 %v294
    %v841 = vunpack.c.l.b16 %v295
    %v842 = vunpack.c.h.b16 %v295
    %v843 = vunpack.c.l.b16 %v296
    %v844 = vunpack.c.h.b16 %v296
    %v845 = vunpack.c.l.b16 %v297
    %v846 = vunpack.c.h.b16 %v297
    %v847 = vunpack.c.l.b16 %v298
    %v848 = vunpack.c.h.b16 %v298
    %v849 = vunpack.c.l.b16 %v299
    %v850 = vunpack.c.h.b16 %v299
    %v851 = vunpack.c.l.b16 %v300
    %v852 = vunpack.c.h.b16 %v300
    %v853 = vunpack.c.l.b16 %v301
    %v854 = vunpack.c.h.b16 %v301
    %v855 = vunpack.c.l.b16 %v302
    %v856 = vunpack.c.h.b16 %v302
    %v857 = vunpack.c.l.b16 %v303
    %v858 = vunpack.c.h.b16 %v303
    %v859 = vunpack.c.l.b16 %v304
    %v860 = vunpack.c.h.b16 %v304
    %v861 = vunpack.c.l.b16 %v305
    %v862 = vunpack.c.h.b16 %v305
    %v863 = vunpack.c.l.b16 %v306
    %v864 = vunpack.c.h.b16 %v306
    %v865 = vunpack.c.l.b16 %v307
    %v866 = vunpack.c.h.b16 %v307
    %v867 = vunpack.c.l.b16 %v308
    %v868 = vunpack.c.h.b16 %v308
    %v869 = vunpack.c.l.b16 %v309
    %v870 = vunpack.c.h.b16 %v309
    %v871 = vunpack.c.l.b16 %v310
    %v872 = vunpack.c.h.b16 %v310
    %v873 = vunpack.c.l.b16 %v311
    %v874 = vunpack.c.h.b16 %v311
    %v875 = vunpack.c.l.b16 %v312
    %v876 = vunpack.c.h.b16 %v312
    %v877 = vunpack.c.l.b16 %v313
    %v878 = vunpack.c.h.b16 %v313
    %v879 = vunpack.c.l.b16 %v314
    %v880 = vunpack.c.h.b16 %v314
    %v881 = vunpack.c.l.b16 %v315
    %v882 = vunpack.c.h.b16 %v315
    %v883 = vunpack.c.l.b16 %v316
    %v884 = vunpack.c.h.b16 %v316
    %v885 = vunpack.c.l.b16 %v317
    %v886 = vunpack.c.h.b16 %v317
    %v887 = vunpack.c.l.b16 %v318
    %v888 = vunpack.c.h.b16 %v318
    %v889 = vunpack.c.l.b16 %v319
    %v890 = vunpack.c.h.b16 %v319
    %v891 = vunpack.c.l.b16 %v320
    %v892 = vunpack.c.h.b16 %v320
    %v893 = vunpack.c.l.b16 %v321
    %v894 = vunpack.c.h.b16 %v321
    %v895 = vunpack.c.l.b16 %v322
    %v896 = vunpack.c.h.b16 %v322
    %v897 = vunpack.c.l.b16 %v323
    %v898 = vunpack.c.h.b16 %v323
    %v899 = vunpack.c.l.b16 %v324
    %v900 = vunpack.c.h.b16 %v324
    %v901 = vunpack.c.l.b16 %v325
    %v902 = vunpack.c.h.b16 %v325
    %v903 = vunpack.c.l.b16 %v326
    %v904 = vunpack.c.h.b16 %v326
    %v905 = vunpack.c.l.b16 %v327
    %v906 = vunpack.c.h.b16 %v327
    %v907 = vunpack.c.l.b16 %v328
    %v908 = vunpack.c.h.b16 %v328
    %v909 = vunpack.c.l.b16 %v329
    %v910 = vunpack.c.h.b16 %v329
    %v911 = vunpack.c.l.b16 %v330
    %v912 = vunpack.c.h.b16 %v330
    %v913 = vunpack.c.l.b16 %v331
    %v914 = vunpack.c.h.b16 %v331
    %v915 = vunpack.c.l.b16 %v332
    %v916 = vunpack.c.h.b16 %v332
    %v917 = vunpack.c.l.b16 %v333
    %v918 = vunpack.c.h.b16 %v333
    %v919 = vunpack.c.l.b16 %v334
    %v920 = vunpack.c.h.b16 %v334
    %v921 = vunpack.c.l.b16 %v335
    %v922 = vunpack.c.h.b16 %v335
    %v923 = vunpack.c.l.b16 %v336
    %v924 = vunpack.c.h.b16 %v336
    %v925 = vunpack.c.l.b16 %v337
    %v926 = vunpack.c.h.b16 %v337
    %v927 = vunpack.c.l.b16 %v338
    %v928 = vunpack.c.h.b16 %v338
    %v929 = vunpack.c.l.b16 %v339
    %v930 = vunpack.c.h.b16 %v339
    %v931 = vunpack.c.l.b16 %v340
    %v932 = vunpack.c.h.b16 %v340
    %v933 = vpack.c.b16 %v843, %v837
    %v934 = vpack.c.b16 %v844, %v838
    %v935 = vpack.c.b16 %v845, %v839
    %v936 = vpack.c.b16 %v846, %v840
    %v937 = vpack.c.b16 %v847, %v841
    %v938 = vpack.c.b16 %v848, %v842
    %v939 = vpack.c.b16 %v855, %v849
    %v940 = vpack.c.b16 %v856, %v850
    %v941 = vpack.c.b16 %v857, %v851
    %v942 = vpack.c.b16 %v858, %v852
    %v943 = vpack.c.b16 %v859, %v853
    %v944 = vpack.c.b16 %v860, %v854
    %v945 = vpack.c.b16 %v867, %v861
    %v946 = vpack.c.b16 %v868, %v862
    %v947 = vpack.c.b16 %v869, %v863
    %v948 = vpack.c.b16 %v870, %v864
    %v949 = vpack.c.b16 %v871, %v865
    %v950 = vpack.c.b16 %v872, %v866
    %v951 = vpack.c.b16 %v879, %v873
    %v952 = vpack.c.b16 %v880, %v874
    %v953 = vpack.c.b16 %v881, %v875
    %v954 = vpack.c.b16 %v882, %v876
    %v955 = vpack.c.b16 %v883, %v877
    %v956 = vpack.c.b16 %v884, %v878
    %v957 = vpack.c.b16 %v891, %v885
    %v958 = vpack.c.b16 %v892, %v886
    %v959 = vpack.c.b16 %v893, %v887
    %v960 = vpack.c.b16 %v894, %v888
    %v961 = vpack.c.b16 %v895, %v889
    %v962 = vpack.c.b16 %v896, %v890
    %v963 = vpack.c.b16 %v903, %v897
    %v964 = vpack.c.b16 %v904, %v898
    %v965 = vpack.c.b16 %v905, %v899
    %v966 = vpack.c.b16 %v906, %v900
    %v967 = vpack.c.b16 %v907, %v901
    %v968 = vpack.c.b16 %v908, %v902
    %v969 = vpack.c.b16 %v915, %v909
    %v970 = vpack.c.b16 %v916, %v910
    %v971 = vpack.c.b16 %v917, %v911
    %v972 = vpack.c.b16 %v918, %v912
    %v973 = vpack.c.b16 %v919, %v913
    %v974 = vpack.c.b16 %v920, %v914
    %v975 = vpack.c.b16 %v927, %v921
    %v976 = vpack.c.b16 %v928, %v922
    %v977 = vpack.c.b16 %v929, %v923
    %v978 = vpack.c.b16 %v930, %v924
    %v979 = vpack.c.b16 %v931, %v925
    %v980 = vpack.c.b16 %v932, %v926
    %1029 = vmatprep.subr.bf16.mxu0 %v934
    %1030 = vmatpush1.bf16.msra.mxu0 %v933
    %1031 = vmatprep.subr.bf16.mxu0 %v940
    %1032 = vmatpush1.bf16.msra.mxu0 %v939
    %1033 = vmatprep.subr.bf16.mxu0 %v946
    %1034 = vmatpush1.bf16.msra.mxu0 %v945
    %1035 = vmatprep.subr.bf16.mxu0 %v952
    %1036 = vmatpush1.bf16.msra.mxu0 %v951
    %1037 = vmatprep.subr.bf16.mxu0 %v958
    %1038 = vmatpush1.bf16.msra.mxu0 %v957
    %1039 = vmatprep.subr.bf16.mxu0 %v964
    %1040 = vmatpush1.bf16.msra.mxu0 %v963
    %1041 = vmatprep.subr.bf16.mxu0 %v970
    %1042 = vmatpush1.bf16.msra.mxu0 %v969
    %1043 = vmatprep.subr.bf16.mxu0 %v976
    %1044 = vmatpush1.bf16.msra.mxu0 %v975
    %1045 = vmatprep.subr.bf16.mxu0 0
    %1046 = vmatpush1.bf16.msra.mxu0 0
    %1047 = vmatprep.subr.bf16.mxu0 0
    %1048 = vmatpush1.bf16.msra.mxu0 0
    %1049 = vmatprep.subr.bf16.mxu0 0
    %1050 = vmatpush1.bf16.msra.mxu0 0
    %1051 = vmatprep.subr.bf16.mxu0 0
    %1052 = vmatpush1.bf16.msra.mxu0 0
    %1053 = vmatprep.subr.bf16.mxu0 0
    %1054 = vmatpush1.bf16.msra.mxu0 0
    %1055 = vmatprep.subr.bf16.mxu0 0
    %1056 = vmatpush1.bf16.msra.mxu0 0
    %1057 = vmatprep.subr.bf16.mxu0 0
    %1058 = vmatpush1.bf16.msra.mxu0 0
    %1059 = vmatprep.subr.bf16.mxu0 0
    %1060 = vmatpush1.bf16.msra.mxu0 0
    %1061 = vmatprep.mubr.bf16.mxu0 0
    %1062 = vmatmul.mubr.bf16.gmra.mrb[0].mxu0 %v164
    %v1063 = vpop.f32.mrb[0].mxu0
    %v1064 = vadd.f32 %v665, %v1063
    %v1065 = vpop.f32.mrb[0].mxu0
    %v1066 = vadd.f32 %v667, %v1065
    %v1067 = vpop.f32.mrb[0].mxu0
    %v1068 = vadd.f32 %v669, %v1067
    %v1069 = vpop.f32.mrb[0].mxu0
    %v1070 = vadd.f32 %v671, %v1069
    %1071 = vmatprep.mubr.bf16.mxu0 0
    %1072 = vmatmul.mubr.bf16.gmra.mrb[0].mxu0 %v165
    %v1073 = vpop.f32.mrb[0].mxu0
    %v1074 = vadd.f32 %v675, %v1073
    %v1075 = vpop.f32.mrb[0].mxu0
    %v1076 = vadd.f32 %v677, %v1075
    %v1077 = vpop.f32.mrb[0].mxu0
    %v1078 = vadd.f32 %v679, %v1077
    %v1079 = vpop.f32.mrb[0].mxu0
    %v1080 = vadd.f32 %v681, %v1079
    %1081 = vdwg.mxu0
    %1082 = vmatprep.subr.bf16.mxu0 %v936
    %1083 = vmatpush1.bf16.msra.mxu0 %v935
    %1084 = vmatprep.subr.bf16.mxu0 %v942
    %1085 = vmatpush1.bf16.msra.mxu0 %v941
    %1086 = vmatprep.subr.bf16.mxu0 %v948
    %1087 = vmatpush1.bf16.msra.mxu0 %v947
    %1088 = vmatprep.subr.bf16.mxu0 %v954
    %1089 = vmatpush1.bf16.msra.mxu0 %v953
    %1090 = vmatprep.subr.bf16.mxu0 %v960
    %1091 = vmatpush1.bf16.msra.mxu0 %v959
    %1092 = vmatprep.subr.bf16.mxu0 %v966
    %1093 = vmatpush1.bf16.msra.mxu0 %v965
    %1094 = vmatprep.subr.bf16.mxu0 %v972
    %1095 = vmatpush1.bf16.msra.mxu0 %v971
    %1096 = vmatprep.subr.bf16.mxu0 %v978
    %1097 = vmatpush1.bf16.msra.mxu0 %v977
    %1098 = vmatprep.subr.bf16.mxu0 0
    %1099 = vmatpush1.bf16.msra.mxu0 0
    %1100 = vmatprep.subr.bf16.mxu0 0
    %1101 = vmatpush1.bf16.msra.mxu0 0
    %1102 = vmatprep.subr.bf16.mxu0 0
    %1103 = vmatpush1.bf16.msra.mxu0 0
    %1104 = vmatprep.subr.bf16.mxu0 0
    %1105 = vmatpush1.bf16.msra.mxu0 0
    %1106 = vmatprep.subr.bf16.mxu0 0
    %1107 = vmatpush1.bf16.msra.mxu0 0
    %1108 = vmatprep.subr.bf16.mxu0 0
    %1109 = vmatpush1.bf16.msra.mxu0 0
    %1110 = vmatprep.subr.bf16.mxu0 0
    %1111 = vmatpush1.bf16.msra.mxu0 0
    %1112 = vmatprep.subr.bf16.mxu0 0
    %1113 = vmatpush1.bf16.msra.mxu0 0
    %1114 = vmatprep.mubr.bf16.mxu0 0
    %1115 = vmatmul.mubr.bf16.gmra.mrb[0].mxu0 %v164
    %v1116 = vpop.f32.mrb[0].mxu0
    %v1117 = vadd.f32 %v718, %v1116
    %v1118 = vpop.f32.mrb[0].mxu0
    %v1119 = vadd.f32 %v720, %v1118
    %v1120 = vpop.f32.mrb[0].mxu0
    %v1121 = vadd.f32 %v722, %v1120
    %v1122 = vpop.f32.mrb[0].mxu0
    %v1123 = vadd.f32 %v724, %v1122
    %1124 = vmatprep.mubr.bf16.mxu0 0
    %1125 = vmatmul.mubr.bf16.gmra.mrb[0].mxu0 %v165
    %v1126 = vpop.f32.mrb[0].mxu0
    %v1127 = vadd.f32 %v728, %v1126
    %v1128 = vpop.f32.mrb[0].mxu0
    %v1129 = vadd.f32 %v730, %v1128
    %v1130 = vpop.f32.mrb[0].mxu0
    %v1131 = vadd.f32 %v732, %v1130
    %v1132 = vpop.f32.mrb[0].mxu0
    %v1133 = vadd.f32 %v734, %v1132
    %1134 = vdwg.mxu0
    %1135 = vmatprep.subr.bf16.mxu0 %v938
    %1136 = vmatpush1.bf16.msra.mxu0 %v937
    %1137 = vmatprep.subr.bf16.mxu0 %v944
    %1138 = vmatpush1.bf16.msra.mxu0 %v943
    %1139 = vmatprep.subr.bf16.mxu0 %v950
    %1140 = vmatpush1.bf16.msra.mxu0 %v949
    %1141 = vmatprep.subr.bf16.mxu0 %v956
    %1142 = vmatpush1.bf16.msra.mxu0 %v955
    %1143 = vmatprep.subr.bf16.mxu0 %v962
    %1144 = vmatpush1.bf16.msra.mxu0 %v961
    %1145 = vmatprep.subr.bf16.mxu0 %v968
    %1146 = vmatpush1.bf16.msra.mxu0 %v967
    %1147 = vmatprep.subr.bf16.mxu0 %v974
    %1148 = vmatpush1.bf16.msra.mxu0 %v973
    %1149 = vmatprep.subr.bf16.mxu0 %v980
    %1150 = vmatpush1.bf16.msra.mxu0 %v979
    %1151 = vmatprep.subr.bf16.mxu0 0
    %1152 = vmatpush1.bf16.msra.mxu0 0
    %1153 = vmatprep.subr.bf16.mxu0 0
    %1154 = vmatpush1.bf16.msra.mxu0 0
    %1155 = vmatprep.subr.bf16.mxu0 0
    %1156 = vmatpush1.bf16.msra.mxu0 0
    %1157 = vmatprep.subr.bf16.mxu0 0
    %1158 = vmatpush1.bf16.msra.mxu0 0
    %1159 = vmatprep.subr.bf16.mxu0 0
    %1160 = vmatpush1.bf16.msra.mxu0 0
    %1161 = vmatprep.subr.bf16.mxu0 0
    %1162 = vmatpush1.bf16.msra.mxu0 0
    %1163 = vmatprep.subr.bf16.mxu0 0
    %1164 = vmatpush1.bf16.msra.mxu0 0
    %1165 = vmatprep.subr.bf16.mxu0 0
    %1166 = vmatpush1.bf16.msra.mxu0 0
    %1167 = vmatprep.mubr.bf16.mxu0 0
    %1168 = vmatmul.mubr.bf16.gmra.mrb[0].mxu0 %v164
    %v1169 = vpop.f32.mrb[0].mxu0
    %v1170 = vadd.f32 %v771, %v1169
    %v1171 = vpop.f32.mrb[0].mxu0
    %v1172 = vadd.f32 %v773, %v1171
    %v1173 = vpop.f32.mrb[0].mxu0
    %v1174 = vadd.f32 %v775, %v1173
    %v1175 = vpop.f32.mrb[0].mxu0
    %v1176 = vadd.f32 %v777, %v1175
    %1177 = vmatprep.mubr.bf16.mxu0 0
    %1178 = vmatmul.mubr.bf16.gmra.mrb[0].mxu0 %v165
    %v1179 = vpop.f32.mrb[0].mxu0
    %v1180 = vadd.f32 %v781, %v1179
    %v1181 = vpop.f32.mrb[0].mxu0
    %v1182 = vadd.f32 %v783, %v1181
    %v1183 = vpop.f32.mrb[0].mxu0
    %v1184 = vadd.f32 %v785, %v1183
    %v1185 = vpop.f32.mrb[0].mxu0
    %v1186 = vadd.f32 %v787, %v1185
    %1187 = vdwg.mxu0
    %s1188 = scalar_lea.vmem [#allocation8], 768
    %v1189 = vld [vmem:[%s1188] sm:$0xff]
    %v1190 = vld [vmem:[%s1188 + $0x8] sm:$0xff]
    %v1191 = vld [vmem:[%s1188 + $0x10] sm:$0xff]
    %v1192 = vld [vmem:[%s1188 + $0x18] sm:$0xff]
    %v1193 = vld [vmem:[%s1188 + $0x20] sm:$0xff]
    %v1194 = vld [vmem:[%s1188 + $0x28] sm:$0xff]
    %v1195 = vld [vmem:[%s1188 + $0x30] sm:$0xff]
    %v1196 = vld [vmem:[%s1188 + $0x38] sm:$0xff]
    %v1197 = vld [vmem:[%s1188 + $0x40] sm:$0xff]
    %v1198 = vld [vmem:[%s1188 + $0x48] sm:$0xff]
    %v1199 = vld [vmem:[%s1188 + $0x50] sm:$0xff]
    %v1200 = vld [vmem:[%s1188 + $0x58] sm:$0xff]
    %v1201 = vld [vmem:[%s1188 + $0x60] sm:$0xff]
    %v1202 = vld [vmem:[%s1188 + $0x68] sm:$0xff]
    %v1203 = vld [vmem:[%s1188 + $0x70] sm:$0xff]
    %v1204 = vld [vmem:[%s1188 + $0x78] sm:$0xff]
    %v1205 = vld [vmem:[%s1188 + $0x80] sm:$0xff]
    %v1206 = vld [vmem:[%s1188 + $0x88] sm:$0xff]
    %v1207 = vld [vmem:[%s1188 + $0x90] sm:$0xff]
    %v1208 = vld [vmem:[%s1188 + $0x98] sm:$0xff]
    %v1209 = vld [vmem:[%s1188 + $0xa0] sm:$0xff]
    %v1210 = vld [vmem:[%s1188 + $0xa8] sm:$0xff]
    %v1211 = vld [vmem:[%s1188 + $0xb0] sm:$0xff]
    %v1212 = vld [vmem:[%s1188 + $0xb8] sm:$0xff]
    %v1213 = vld [vmem:[%s1188 + $0xc0] sm:$0xff]
    %v1214 = vld [vmem:[%s1188 + $0xc8] sm:$0xff]
    %v1215 = vld [vmem:[%s1188 + $0xd0] sm:$0xff]
    %v1216 = vld [vmem:[%s1188 + $0xd8] sm:$0xff]
    %v1217 = vld [vmem:[%s1188 + $0xe0] sm:$0xff]
    %v1218 = vld [vmem:[%s1188 + $0xe8] sm:$0xff]
    %v1219 = vld [vmem:[%s1188 + $0xf0] sm:$0xff]
    %v1220 = vld [vmem:[%s1188 + $0xf8] sm:$0xff]
    %v1221 = vld [vmem:[%s1188 + $0x100] sm:$0xff]
    %v1222 = vld [vmem:[%s1188 + $0x108] sm:$0xff]
    %v1223 = vld [vmem:[%s1188 + $0x110] sm:$0xff]
    %v1224 = vld [vmem:[%s1188 + $0x118] sm:$0xff]
    %v1225 = vld [vmem:[%s1188 + $0x120] sm:$0xff]
    %v1226 = vld [vmem:[%s1188 + $0x128] sm:$0xff]
    %v1227 = vld [vmem:[%s1188 + $0x130] sm:$0xff]
    %v1228 = vld [vmem:[%s1188 + $0x138] sm:$0xff]
    %v1229 = vld [vmem:[%s1188 + $0x140] sm:$0xff]
    %v1230 = vld [vmem:[%s1188 + $0x148] sm:$0xff]
    %v1231 = vld [vmem:[%s1188 + $0x150] sm:$0xff]
    %v1232 = vld [vmem:[%s1188 + $0x158] sm:$0xff]
    %v1233 = vld [vmem:[%s1188 + $0x160] sm:$0xff]
    %v1234 = vld [vmem:[%s1188 + $0x168] sm:$0xff]
    %v1235 = vld [vmem:[%s1188 + $0x170] sm:$0xff]
    %v1236 = vld [vmem:[%s1188 + $0x178] sm:$0xff]
    %v1285 = vunpack.c.l.b16 %v1189
    %v1286 = vunpack.c.h.b16 %v1189
    %v1287 = vunpack.c.l.b16 %v1190
    %v1288 = vunpack.c.h.b16 %v1190
    %v1289 = vunpack.c.l.b16 %v1191
    %v1290 = vunpack.c.h.b16 %v1191
    %v1291 = vunpack.c.l.b16 %v1192
    %v1292 = vunpack.c.h.b16 %v1192
    %v1293 = vunpack.c.l.b16 %v1193
    %v1294 = vunpack.c.h.b16 %v1193
    %v1295 = vunpack.c.l.b16 %v1194
    %v1296 = vunpack.c.h.b16 %v1194
    %v1297 = vunpack.c.l.b16 %v1195
    %v1298 = vunpack.c.h.b16 %v1195
    %v1299 = vunpack.c.l.b16 %v1196
    %v1300 = vunpack.c.h.b16 %v1196
    %v1301 = vunpack.c.l.b16 %v1197
    %v1302 = vunpack.c.h.b16 %v1197
    %v1303 = vunpack.c.l.b16 %v1198
    %v1304 = vunpack.c.h.b16 %v1198
    %v1305 = vunpack.c.l.b16 %v1199
    %v1306 = vunpack.c.h.b16 %v1199
    %v1307 = vunpack.c.l.b16 %v1200
    %v1308 = vunpack.c.h.b16 %v1200
    %v1309 = vunpack.c.l.b16 %v1201
    %v1310 = vunpack.c.h.b16 %v1201
    %v1311 = vunpack.c.l.b16 %v1202
    %v1312 = vunpack.c.h.b16 %v1202
    %v1313 = vunpack.c.l.b16 %v1203
    %v1314 = vunpack.c.h.b16 %v1203
    %v1315 = vunpack.c.l.b16 %v1204
    %v1316 = vunpack.c.h.b16 %v1204
    %v1317 = vunpack.c.l.b16 %v1205
    %v1318 = vunpack.c.h.b16 %v1205
    %v1319 = vunpack.c.l.b16 %v1206
    %v1320 = vunpack.c.h.b16 %v1206
    %v1321 = vunpack.c.l.b16 %v1207
    %v1322 = vunpack.c.h.b16 %v1207
    %v1323 = vunpack.c.l.b16 %v1208
    %v1324 = vunpack.c.h.b16 %v1208
    %v1325 = vunpack.c.l.b16 %v1209
    %v1326 = vunpack.c.h.b16 %v1209
    %v1327 = vunpack.c.l.b16 %v1210
    %v1328 = vunpack.c.h.b16 %v1210
    %v1329 = vunpack.c.l.b16 %v1211
    %v1330 = vunpack.c.h.b16 %v1211
    %v1331 = vunpack.c.l.b16 %v1212
    %v1332 = vunpack.c.h.b16 %v1212
    %v1333 = vunpack.c.l.b16 %v1213
    %v1334 = vunpack.c.h.b16 %v1213
    %v1335 = vunpack.c.l.b16 %v1214
    %v1336 = vunpack.c.h.b16 %v1214
    %v1337 = vunpack.c.l.b16 %v1215
    %v1338 = vunpack.c.h.b16 %v1215
    %v1339 = vunpack.c.l.b16 %v1216
    %v1340 = vunpack.c.h.b16 %v1216
    %v1341 = vunpack.c.l.b16 %v1217
    %v1342 = vunpack.c.h.b16 %v1217
    %v1343 = vunpack.c.l.b16 %v1218
    %v1344 = vunpack.c.h.b16 %v1218
    %v1345 = vunpack.c.l.b16 %v1219
    %v1346 = vunpack.c.h.b16 %v1219
    %v1347 = vunpack.c.l.b16 %v1220
    %v1348 = vunpack.c.h.b16 %v1220
    %v1349 = vunpack.c.l.b16 %v1221
    %v1350 = vunpack.c.h.b16 %v1221
    %v1351 = vunpack.c.l.b16 %v1222
    %v1352 = vunpack.c.h.b16 %v1222
    %v1353 = vunpack.c.l.b16 %v1223
    %v1354 = vunpack.c.h.b16 %v1223
    %v1355 = vunpack.c.l.b16 %v1224
    %v1356 = vunpack.c.h.b16 %v1224
    %v1357 = vunpack.c.l.b16 %v1225
    %v1358 = vunpack.c.h.b16 %v1225
    %v1359 = vunpack.c.l.b16 %v1226
    %v1360 = vunpack.c.h.b16 %v1226
    %v1361 = vunpack.c.l.b16 %v1227
    %v1362 = vunpack.c.h.b16 %v1227
    %v1363 = vunpack.c.l.b16 %v1228
    %v1364 = vunpack.c.h.b16 %v1228
    %v1365 = vunpack.c.l.b16 %v1229
    %v1366 = vunpack.c.h.b16 %v1229
    %v1367 = vunpack.c.l.b16 %v1230
    %v1368 = vunpack.c.h.b16 %v1230
    %v1369 = vunpack.c.l.b16 %v1231
    %v1370 = vunpack.c.h.b16 %v1231
    %v1371 = vunpack.c.l.b16 %v1232
    %v1372 = vunpack.c.h.b16 %v1232
    %v1373 = vunpack.c.l.b16 %v1233
    %v1374 = vunpack.c.h.b16 %v1233
    %v1375 = vunpack.c.l.b16 %v1234
    %v1376 = vunpack.c.h.b16 %v1234
    %v1377 = vunpack.c.l.b16 %v1235
    %v1378 = vunpack.c.h.b16 %v1235
    %v1379 = vunpack.c.l.b16 %v1236
    %v1380 = vunpack.c.h.b16 %v1236
    %v1381 = vpack.c.b16 %v1291, %v1285
    %v1382 = vpack.c.b16 %v1292, %v1286
    %v1383 = vpack.c.b16 %v1293, %v1287
    %v1384 = vpack.c.b16 %v1294, %v1288
    %v1385 = vpack.c.b16 %v1295, %v1289
    %v1386 = vpack.c.b16 %v1296, %v1290
    %v1387 = vpack.c.b16 %v1303, %v1297
    %v1388 = vpack.c.b16 %v1304, %v1298
    %v1389 = vpack.c.b16 %v1305, %v1299
    %v1390 = vpack.c.b16 %v1306, %v1300
    %v1391 = vpack.c.b16 %v1307, %v1301
    %v1392 = vpack.c.b16 %v1308, %v1302
    %v1393 = vpack.c.b16 %v1315, %v1309
    %v1394 = vpack.c.b16 %v1316, %v1310
    %v1395 = vpack.c.b16 %v1317, %v1311
    %v1396 = vpack.c.b16 %v1318, %v1312
    %v1397 = vpack.c.b16 %v1319, %v1313
    %v1398 = vpack.c.b16 %v1320, %v1314
    %v1399 = vpack.c.b16 %v1327, %v1321
    %v1400 = vpack.c.b16 %v1328, %v1322
    %v1401 = vpack.c.b16 %v1329, %v1323
    %v1402 = vpack.c.b16 %v1330, %v1324
    %v1403 = vpack.c.b16 %v1331, %v1325
    %v1404 = vpack.c.b16 %v1332, %v1326
    %v1405 = vpack.c.b16 %v1339, %v1333
    %v1406 = vpack.c.b16 %v1340, %v1334
    %v1407 = vpack.c.b16 %v1341, %v1335
    %v1408 = vpack.c.b16 %v1342, %v1336
    %v1409 = vpack.c.b16 %v1343, %v1337
    %v1410 = vpack.c.b16 %v1344, %v1338
    %v1411 = vpack.c.b16 %v1351, %v1345
    %v1412 = vpack.c.b16 %v1352, %v1346
    %v1413 = vpack.c.b16 %v1353, %v1347
    %v1414 = vpack.c.b16 %v1354, %v1348
    %v1415 = vpack.c.b16 %v1355, %v1349
    %v1416 = vpack.c.b16 %v1356, %v1350
    %v1417 = vpack.c.b16 %v1363, %v1357
    %v1418 = vpack.c.b16 %v1364, %v1358
    %v1419 = vpack.c.b16 %v1365, %v1359
    %v1420 = vpack.c.b16 %v1366, %v1360
    %v1421 = vpack.c.b16 %v1367, %v1361
    %v1422 = vpack.c.b16 %v1368, %v1362
    %v1423 = vpack.c.b16 %v1375, %v1369
    %v1424 = vpack.c.b16 %v1376, %v1370
    %v1425 = vpack.c.b16 %v1377, %v1371
    %v1426 = vpack.c.b16 %v1378, %v1372
    %v1427 = vpack.c.b16 %v1379, %v1373
    %v1428 = vpack.c.b16 %v1380, %v1374
    %1477 = vmatprep.subr.bf16.mxu0 %v1382
    %1478 = vmatpush1.bf16.msra.mxu0 %v1381
    %1479 = vmatprep.subr.bf16.mxu0 %v1388
    %1480 = vmatpush1.bf16.msra.mxu0 %v1387
    %1481 = vmatprep.subr.bf16.mxu0 %v1394
    %1482 = vmatpush1.bf16.msra.mxu0 %v1393
    %1483 = vmatprep.subr.bf16.mxu0 %v1400
    %1484 = vmatpush1.bf16.msra.mxu0 %v1399
    %1485 = vmatprep.subr.bf16.mxu0 %v1406
    %1486 = vmatpush1.bf16.msra.mxu0 %v1405
    %1487 = vmatprep.subr.bf16.mxu0 %v1412
    %1488 = vmatpush1.bf16.msra.mxu0 %v1411
    %1489 = vmatprep.subr.bf16.mxu0 %v1418
    %1490 = vmatpush1.bf16.msra.mxu0 %v1417
    %1491 = vmatprep.subr.bf16.mxu0 %v1424
    %1492 = vmatpush1.bf16.msra.mxu0 %v1423
    %1493 = vmatprep.subr.bf16.mxu0 0
    %1494 = vmatpush1.bf16.msra.mxu0 0
    %1495 = vmatprep.subr.bf16.mxu0 0
    %1496 = vmatpush1.bf16.msra.mxu0 0
    %1497 = vmatprep.subr.bf16.mxu0 0
    %1498 = vmatpush1.bf16.msra.mxu0 0
    %1499 = vmatprep.subr.bf16.mxu0 0
    %1500 = vmatpush1.bf16.msra.mxu0 0
    %1501 = vmatprep.subr.bf16.mxu0 0
    %1502 = vmatpush1.bf16.msra.mxu0 0
    %1503 = vmatprep.subr.bf16.mxu0 0
    %1504 = vmatpush1.bf16.msra.mxu0 0
    %1505 = vmatprep.subr.bf16.mxu0 0
    %1506 = vmatpush1.bf16.msra.mxu0 0
    %1507 = vmatprep.subr.bf16.mxu0 0
    %1508 = vmatpush1.bf16.msra.mxu0 0
    %1509 = vmatprep.mubr.bf16.mxu0 0
    %1510 = vmatmul.mubr.bf16.gmra.mrb[0].mxu0 %v291
    %v1511 = vpop.f32.mrb[0].mxu0
    %v1512 = vadd.f32 0.0, %v1511
    %v1513 = vpop.f32.mrb[0].mxu0
    %v1514 = vadd.f32 0.0, %v1513
    %v1515 = vpop.f32.mrb[0].mxu0
    %v1516 = vadd.f32 0.0, %v1515
    %v1517 = vpop.f32.mrb[0].mxu0
    %v1518 = vadd.f32 0.0, %v1517
    %1519 = vmatprep.mubr.bf16.mxu0 0
    %1520 = vmatmul.mubr.bf16.gmra.mrb[0].mxu0 %v292
    %v1521 = vpop.f32.mrb[0].mxu0
    %v1522 = vadd.f32 0.0, %v1521
    %v1523 = vpop.f32.mrb[0].mxu0
    %v1524 = vadd.f32 0.0, %v1523
    %v1525 = vpop.f32.mrb[0].mxu0
    %v1526 = vadd.f32 0.0, %v1525
    %v1527 = vpop.f32.mrb[0].mxu0
    %v1528 = vadd.f32 0.0, %v1527
    %1529 = vdwg.mxu0
    %1530 = vmatprep.subr.bf16.mxu0 %v1384
    %1531 = vmatpush1.bf16.msra.mxu0 %v1383
    %1532 = vmatprep.subr.bf16.mxu0 %v1390
    %1533 = vmatpush1.bf16.msra.mxu0 %v1389
    %1534 = vmatprep.subr.bf16.mxu0 %v1396
    %1535 = vmatpush1.bf16.msra.mxu0 %v1395
    %1536 = vmatprep.subr.bf16.mxu0 %v1402
    %1537 = vmatpush1.bf16.msra.mxu0 %v1401
    %1538 = vmatprep.subr.bf16.mxu0 %v1408
    %1539 = vmatpush1.bf16.msra.mxu0 %v1407
    %1540 = vmatprep.subr.bf16.mxu0 %v1414
    %1541 = vmatpush1.bf16.msra.mxu0 %v1413
    %1542 = vmatprep.subr.bf16.mxu0 %v1420
    %1543 = vmatpush1.bf16.msra.mxu0 %v1419
    %1544 = vmatprep.subr.bf16.mxu0 %v1426
    %1545 = vmatpush1.bf16.msra.mxu0 %v1425
    %1546 = vmatprep.subr.bf16.mxu0 0
    %1547 = vmatpush1.bf16.msra.mxu0 0
    %1548 = vmatprep.subr.bf16.mxu0 0
    %1549 = vmatpush1.bf16.msra.mxu0 0
    %1550 = vmatprep.subr.bf16.mxu0 0
    %1551 = vmatpush1.bf16.msra.mxu0 0
    %1552 = vmatprep.subr.bf16.mxu0 0
    %1553 = vmatpush1.bf16.msra.mxu0 0
    %1554 = vmatprep.subr.bf16.mxu0 0
    %1555 = vmatpush1.bf16.msra.mxu0 0
    %1556 = vmatprep.subr.bf16.mxu0 0
    %1557 = vmatpush1.bf16.msra.mxu0 0
    %1558 = vmatprep.subr.bf16.mxu0 0
    %1559 = vmatpush1.bf16.msra.mxu0 0
    %1560 = vmatprep.subr.bf16.mxu0 0
    %1561 = vmatpush1.bf16.msra.mxu0 0
    %1562 = vmatprep.mubr.bf16.mxu0 0
    %1563 = vmatmul.mubr.bf16.gmra.mrb[0].mxu0 %v291
    %v1564 = vpop.f32.mrb[0].mxu0
    %v1565 = vadd.f32 0.0, %v1564
    %v1566 = vpop.f32.mrb[0].mxu0
    %v1567 = vadd.f32 0.0, %v1566
    %v1568 = vpop.f32.mrb[0].mxu0
    %v1569 = vadd.f32 0.0, %v1568
    %v1570 = vpop.f32.mrb[0].mxu0
    %v1571 = vadd.f32 0.0, %v1570
    %1572 = vmatprep.mubr.bf16.mxu0 0
    %1573 = vmatmul.mubr.bf16.gmra.mrb[0].mxu0 %v292
    %v1574 = vpop.f32.mrb[0].mxu0
    %v1575 = vadd.f32 0.0, %v1574
    %v1576 = vpop.f32.mrb[0].mxu0
    %v1577 = vadd.f32 0.0, %v1576
    %v1578 = vpop.f32.mrb[0].mxu0
    %v1579 = vadd.f32 0.0, %v1578
    %v1580 = vpop.f32.mrb[0].mxu0
    %v1581 = vadd.f32 0.0, %v1580
    %1582 = vdwg.mxu0
    %1583 = vmatprep.subr.bf16.mxu0 %v1386
    %1584 = vmatpush1.bf16.msra.mxu0 %v1385
    %1585 = vmatprep.subr.bf16.mxu0 %v1392
    %1586 = vmatpush1.bf16.msra.mxu0 %v1391
    %1587 = vmatprep.subr.bf16.mxu0 %v1398
    %1588 = vmatpush1.bf16.msra.mxu0 %v1397
    %1589 = vmatprep.subr.bf16.mxu0 %v1404
    %1590 = vmatpush1.bf16.msra.mxu0 %v1403
    %1591 = vmatprep.subr.bf16.mxu0 %v1410
    %1592 = vmatpush1.bf16.msra.mxu0 %v1409
    %1593 = vmatprep.subr.bf16.mxu0 %v1416
    %1594 = vmatpush1.bf16.msra.mxu0 %v1415
    %1595 = vmatprep.subr.bf16.mxu0 %v1422
    %1596 = vmatpush1.bf16.msra.mxu0 %v1421
    %1597 = vmatprep.subr.bf16.mxu0 %v1428
    %1598 = vmatpush1.bf16.msra.mxu0 %v1427
    %1599 = vmatprep.subr.bf16.mxu0 0
    %1600 = vmatpush1.bf16.msra.mxu0 0
    %1601 = vmatprep.subr.bf16.mxu0 0
    %1602 = vmatpush1.bf16.msra.mxu0 0
    %1603 = vmatprep.subr.bf16.mxu0 0
    %1604 = vmatpush1.bf16.msra.mxu0 0
    %1605 = vmatprep.subr.bf16.mxu0 0
    %1606 = vmatpush1.bf16.msra.mxu0 0
    %1607 = vmatprep.subr.bf16.mxu0 0
    %1608 = vmatpush1.bf16.msra.mxu0 0
    %1609 = vmatprep.subr.bf16.mxu0 0
    %1610 = vmatpush1.bf16.msra.mxu0 0
    %1611 = vmatprep.subr.bf16.mxu0 0
    %1612 = vmatpush1.bf16.msra.mxu0 0
    %1613 = vmatprep.subr.bf16.mxu0 0
    %1614 = vmatpush1.bf16.msra.mxu0 0
    %1615 = vmatprep.mubr.bf16.mxu0 0
    %1616 = vmatmul.mubr.bf16.gmra.mrb[0].mxu0 %v291
    %v1617 = vpop.f32.mrb[0].mxu0
    %v1618 = vadd.f32 0.0, %v1617
    %v1619 = vpop.f32.mrb[0].mxu0
    %v1620 = vadd.f32 0.0, %v1619
    %v1621 = vpop.f32.mrb[0].mxu0
    %v1622 = vadd.f32 0.0, %v1621
    %v1623 = vpop.f32.mrb[0].mxu0
    %v1624 = vadd.f32 0.0, %v1623
    %1625 = vmatprep.mubr.bf16.mxu0 0
    %1626 = vmatmul.mubr.bf16.gmra.mrb[0].mxu0 %v292
    %v1627 = vpop.f32.mrb[0].mxu0
    %v1628 = vadd.f32 0.0, %v1627
    %v1629 = vpop.f32.mrb[0].mxu0
    %v1630 = vadd.f32 0.0, %v1629
    %v1631 = vpop.f32.mrb[0].mxu0
    %v1632 = vadd.f32 0.0, %v1631
    %v1633 = vpop.f32.mrb[0].mxu0
    %v1634 = vadd.f32 0.0, %v1633
    %1635 = vdwg.mxu0
    %v1636 = vadd.f32 %v1064, %v1512
    %v1637 = vadd.f32 %v1066, %v1514
    %v1638 = vadd.f32 %v1117, %v1565
    %v1639 = vadd.f32 %v1119, %v1567
    %v1640 = vadd.f32 %v1170, %v1618
    %v1641 = vadd.f32 %v1172, %v1620
    %v1642 = vadd.f32 %v1068, %v1516
    %v1643 = vadd.f32 %v1070, %v1518
    %v1644 = vadd.f32 %v1121, %v1569
    %v1645 = vadd.f32 %v1123, %v1571
    %v1646 = vadd.f32 %v1174, %v1622
    %v1647 = vadd.f32 %v1176, %v1624
    %v1648 = vadd.f32 %v1074, %v1522
    %v1649 = vadd.f32 %v1076, %v1524
    %v1650 = vadd.f32 %v1127, %v1575
    %v1651 = vadd.f32 %v1129, %v1577
    %v1652 = vadd.f32 %v1180, %v1628
    %v1653 = vadd.f32 %v1182, %v1630
    %v1654 = vadd.f32 %v1078, %v1526
    %v1655 = vadd.f32 %v1080, %v1528
    %v1656 = vadd.f32 %v1131, %v1579
    %v1657 = vadd.f32 %v1133, %v1581
    %v1658 = vadd.f32 %v1184, %v1632
    %v1659 = vadd.f32 %v1186, %v1634
    %v1660 = vmul.f32 %v1636, %v170
    %v1661 = vmul.f32 %v1637, %v171
    %v1662 = vmul.f32 %v1642, %v172
    %v1663 = vmul.f32 %v1643, %v173
    %v1664 = vmul.f32 %v1648, %v170
    %v1665 = vmul.f32 %v1649, %v171
    %v1666 = vmul.f32 %v1654, %v172
    %v1667 = vmul.f32 %v1655, %v173
    %v1668 = vadd.f32 %v1660, %v1661
    %v1669 = vadd.f32 %v1662, %v1663
    %v1670 = vadd.f32 %v1664, %v1665
    %v1671 = vadd.f32 %v1666, %v1667
    %1672 = vrot.lane.b32.xlu0 %v1668, 64
    %v1673 = vpop.permute.xlu0 %1672
    %1674 = vrot.lane.b32.xlu0 %v1669, 64
    %v1675 = vpop.permute.xlu0 %1674
    %1676 = vrot.lane.b32.xlu0 %v1670, 64
    %v1677 = vpop.permute.xlu0 %1676
    %1678 = vrot.lane.b32.xlu0 %v1671, 64
    %v1679 = vpop.permute.xlu0 %1678
    %v1680 = vlaneseq
    %v1681 = vand.u32 %v1680, 127
    %v1682 = vadd.f32 %v1668, %v1673
    %v1683 = vadd.f32 %v1669, %v1675
    %v1684 = vadd.f32 %v1670, %v1677
    %v1685 = vadd.f32 %v1671, %v1679
    %1686 = vrot.lane.b32.xlu0 %v1682, 96
    %v1687 = vpop.permute.xlu0 %1686
    %1688 = vrot.lane.b32.xlu0 %v1683, 96
    %v1689 = vpop.permute.xlu0 %1688
    %1690 = vrot.lane.b32.xlu0 %v1684, 96
    %v1691 = vpop.permute.xlu0 %1690
    %1692 = vrot.lane.b32.xlu0 %v1685, 96
    %v1693 = vpop.permute.xlu0 %1692
    %v1694 = vadd.f32 %v1682, %v1687
    %v1695 = vadd.f32 %v1683, %v1689
    %v1696 = vadd.f32 %v1684, %v1691
    %v1697 = vadd.f32 %v1685, %v1693
    %v1698 = vld [vmem:[#allocation13] sm:$0xff]
    %v1699 = vld [vmem:[#allocation13 + $0x8] sm:$0xff]
    %v1700 = vadd.f32 %v1694, %v1698
    %v1701 = vadd.f32 %v1695, %v1699
    %v1702 = vadd.f32 %v1696, %v1698
    %v1703 = vadd.f32 %v1697, %v1699
    %v1704 = vxor.u32 %v1700, 2147483648
    %v1705 = vxor.u32 %v1701, 2147483648
    %v1706 = vxor.u32 %v1702, 2147483648
    %v1707 = vxor.u32 %v1703, 2147483648
    %v1708 = vmul.f32 %v1704, 1.442695
    %v1709 = vpow.pop %v1708
    %v1710 = vmul.f32 %v1705, 1.442695
    %v1711 = vpow.pop %v1710
    %v1712 = vmul.f32 %v1706, 1.442695
    %v1713 = vpow.pop %v1712
    %v1714 = vmul.f32 %v1707, 1.442695
    %v1715 = vpow.pop %v1714
    %v1716 = vadd.f32 %v1709, 1.0
    %v1717 = vadd.f32 %v1711, 1.0
    %v1718 = vadd.f32 %v1713, 1.0
    %v1719 = vadd.f32 %v1715, 1.0
    %v1720 = vrcp.pop %v1716
    %v1721 = vmul.f32 1.0, %v1720
    %v1722 = vrcp.pop %v1717
    %v1723 = vmul.f32 1.0, %v1722
    %v1724 = vrcp.pop %v1718
    %v1725 = vmul.f32 1.0, %v1724
    %v1726 = vrcp.pop %v1719
    %v1727 = vmul.f32 1.0, %v1726
    %v1728 = vmul.f32 %v1638, %v170
    %v1729 = vmul.f32 %v1639, %v171
    %v1730 = vmul.f32 %v1644, %v172
    %v1731 = vmul.f32 %v1645, %v173
    %v1732 = vmul.f32 %v1650, %v170
    %v1733 = vmul.f32 %v1651, %v171
    %v1734 = vmul.f32 %v1656, %v172
    %v1735 = vmul.f32 %v1657, %v173
    %v1736 = vadd.f32 %v1728, %v1729
    %v1737 = vadd.f32 %v1730, %v1731
    %v1738 = vadd.f32 %v1732, %v1733
    %v1739 = vadd.f32 %v1734, %v1735
    %1740 = vrot.lane.b32.xlu0 %v1736, 64
    %v1741 = vpop.permute.xlu0 %1740
    %1742 = vrot.lane.b32.xlu0 %v1737, 64
    %v1743 = vpop.permute.xlu0 %1742
    %1744 = vrot.lane.b32.xlu0 %v1738, 64
    %v1745 = vpop.permute.xlu0 %1744
    %1746 = vrot.lane.b32.xlu0 %v1739, 64
    %v1747 = vpop.permute.xlu0 %1746
    %v1748 = vadd.f32 %v1736, %v1741
    %v1749 = vadd.f32 %v1737, %v1743
    %v1750 = vadd.f32 %v1738, %v1745
    %v1751 = vadd.f32 %v1739, %v1747
    %1752 = vrot.lane.b32.xlu0 %v1748, 96
    %v1753 = vpop.permute.xlu0 %1752
    %1754 = vrot.lane.b32.xlu0 %v1749, 96
    %v1755 = vpop.permute.xlu0 %1754
    %1756 = vrot.lane.b32.xlu0 %v1750, 96
    %v1757 = vpop.permute.xlu0 %1756
    %1758 = vrot.lane.b32.xlu0 %v1751, 96
    %v1759 = vpop.permute.xlu0 %1758
    %v1760 = vadd.f32 %v1748, %v1753
    %v1761 = vadd.f32 %v1749, %v1755
    %v1762 = vadd.f32 %v1750, %v1757
    %v1763 = vadd.f32 %v1751, %v1759
    %v1764 = vld [vmem:[#allocation14] sm:$0xff]
    %v1765 = vld [vmem:[#allocation14 + $0x8] sm:$0xff]
    %v1766 = vadd.f32 %v1760, %v1764
    %v1767 = vadd.f32 %v1761, %v1765
    %v1768 = vadd.f32 %v1762, %v1764
    %v1769 = vadd.f32 %v1763, %v1765
    %v1770 = vxor.u32 %v1766, 2147483648
    %v1771 = vxor.u32 %v1767, 2147483648
    %v1772 = vxor.u32 %v1768, 2147483648
    %v1773 = vxor.u32 %v1769, 2147483648
    %v1774 = vmul.f32 %v1770, 1.442695
    %v1775 = vpow.pop %v1774
    %v1776 = vmul.f32 %v1771, 1.442695
    %v1777 = vpow.pop %v1776
    %v1778 = vmul.f32 %v1772, 1.442695
    %v1779 = vpow.pop %v1778
    %v1780 = vmul.f32 %v1773, 1.442695
    %v1781 = vpow.pop %v1780
    %v1782 = vadd.f32 %v1775, 1.0
    %v1783 = vadd.f32 %v1777, 1.0
    %v1784 = vadd.f32 %v1779, 1.0
    %v1785 = vadd.f32 %v1781, 1.0
    %v1786 = vrcp.pop %v1782
    %v1787 = vmul.f32 1.0, %v1786
    %v1788 = vrcp.pop %v1783
    %v1789 = vmul.f32 1.0, %v1788
    %v1790 = vrcp.pop %v1784
    %v1791 = vmul.f32 1.0, %v1790
    %v1792 = vrcp.pop %v1785
    %v1793 = vmul.f32 1.0, %v1792
    %v1794 = vmul.f32 %v1721, %v156
    %v1795 = vmul.f32 %v1723, %v157
    %v1796 = vmul.f32 %v1725, %v158
    %v1797 = vmul.f32 %v1727, %v159
    %v1798 = vpack.c.bf16 %v1795, %v1794
    %v1799 = vpack.c.bf16 %v1797, %v1796
    %1800 = vmatprep.subr.bf16.mxu0 0
    %1801 = vmatpush1.bf16.msra.mxu0 %v1798
    %1802 = vmatprep.subr.bf16.mxu0 0
    %1803 = vmatpush1.bf16.msra.mxu0 0
    %1804 = vmatprep.subr.bf16.mxu0 0
    %1805 = vmatpush1.bf16.msra.mxu0 0
    %1806 = vmatprep.subr.bf16.mxu0 0
    %1807 = vmatpush1.bf16.msra.mxu0 0
    %1808 = vmatprep.subr.bf16.mxu0 0
    %1809 = vmatpush1.bf16.msra.mxu0 0
    %1810 = vmatprep.subr.bf16.mxu0 0
    %1811 = vmatpush1.bf16.msra.mxu0 0
    %1812 = vmatprep.subr.bf16.mxu0 0
    %1813 = vmatpush1.bf16.msra.mxu0 0
    %1814 = vmatprep.subr.bf16.mxu0 0
    %1815 = vmatpush1.bf16.msra.mxu0 0
    %1816 = vmatprep.subr.bf16.mxu0 0
    %1817 = vmatpush1.bf16.msra.mxu0 0
    %1818 = vmatprep.subr.bf16.mxu0 0
    %1819 = vmatpush1.bf16.msra.mxu0 0
    %1820 = vmatprep.subr.bf16.mxu0 0
    %1821 = vmatpush1.bf16.msra.mxu0 0
    %1822 = vmatprep.subr.bf16.mxu0 0
    %1823 = vmatpush1.bf16.msra.mxu0 0
    %1824 = vmatprep.subr.bf16.mxu0 0
    %1825 = vmatpush1.bf16.msra.mxu0 0
    %1826 = vmatprep.subr.bf16.mxu0 0
    %1827 = vmatpush1.bf16.msra.mxu0 0
    %1828 = vmatprep.subr.bf16.mxu0 0
    %1829 = vmatpush1.bf16.msra.mxu0 0
    %1830 = vmatprep.subr.bf16.mxu0 0
    %1831 = vmatpush1.bf16.msra.mxu0 0
    %1832 = vmatprep.mubr.bf16.mxu0 0
    %1833 = vmatmul.mubr.bf16.gmra.mrb[0].mxu0 %v186
    %v1834 = vpop.f32.mrb[0].mxu0
    %v1835 = vadd.f32 0.0, %v1834
    %v1836 = vpop.f32.mrb[0].mxu0
    %v1837 = vpop.f32.mrb[0].mxu0
    %v1838 = vadd.f32 0.0, %v1837
    %v1839 = vpop.f32.mrb[0].mxu0
    %1840 = vmatprep.mubr.bf16.mxu0 0
    %1841 = vmatmul.mubr.bf16.gmra.mrb[0].mxu0 %v189
    %v1842 = vpop.f32.mrb[0].mxu0
    %v1843 = vadd.f32 0.0, %v1842
    %v1844 = vpop.f32.mrb[0].mxu0
    %v1845 = vpop.f32.mrb[0].mxu0
    %v1846 = vadd.f32 0.0, %v1845
    %v1847 = vpop.f32.mrb[0].mxu0
    %1848 = vdwg.mxu0
    %1849 = vmatprep.subr.bf16.mxu0 0
    %1850 = vmatpush1.bf16.msra.mxu0 %v1799
    %1851 = vmatprep.subr.bf16.mxu0 0
    %1852 = vmatpush1.bf16.msra.mxu0 0
    %1853 = vmatprep.subr.bf16.mxu0 0
    %1854 = vmatpush1.bf16.msra.mxu0 0
    %1855 = vmatprep.subr.bf16.mxu0 0
    %1856 = vmatpush1.bf16.msra.mxu0 0
    %1857 = vmatprep.subr.bf16.mxu0 0
    %1858 = vmatpush1.bf16.msra.mxu0 0
    %1859 = vmatprep.subr.bf16.mxu0 0
    %1860 = vmatpush1.bf16.msra.mxu0 0
    %1861 = vmatprep.subr.bf16.mxu0 0
    %1862 = vmatpush1.bf16.msra.mxu0 0
    %1863 = vmatprep.subr.bf16.mxu0 0
    %1864 = vmatpush1.bf16.msra.mxu0 0
    %1865 = vmatprep.subr.bf16.mxu0 0
    %1866 = vmatpush1.bf16.msra.mxu0 0
    %1867 = vmatprep.subr.bf16.mxu0 0
    %1868 = vmatpush1.bf16.msra.mxu0 0
    %1869 = vmatprep.subr.bf16.mxu0 0
    %1870 = vmatpush1.bf16.msra.mxu0 0
    %1871 = vmatprep.subr.bf16.mxu0 0
    %1872 = vmatpush1.bf16.msra.mxu0 0
    %1873 = vmatprep.subr.bf16.mxu0 0
    %1874 = vmatpush1.bf16.msra.mxu0 0
    %1875 = vmatprep.subr.bf16.mxu0 0
    %1876 = vmatpush1.bf16.msra.mxu0 0
    %1877 = vmatprep.subr.bf16.mxu0 0
    %1878 = vmatpush1.bf16.msra.mxu0 0
    %1879 = vmatprep.subr.bf16.mxu0 0
    %1880 = vmatpush1.bf16.msra.mxu0 0
    %1881 = vmatprep.mubr.bf16.mxu0 0
    %1882 = vmatmul.mubr.bf16.gmra.mrb[0].mxu0 %v186
    %v1883 = vpop.f32.mrb[0].mxu0
    %v1884 = vadd.f32 0.0, %v1883
    %v1885 = vpop.f32.mrb[0].mxu0
    %v1886 = vpop.f32.mrb[0].mxu0
    %v1887 = vadd.f32 0.0, %v1886
    %v1888 = vpop.f32.mrb[0].mxu0
    %1889 = vmatprep.mubr.bf16.mxu0 0
    %1890 = vmatmul.mubr.bf16.gmra.mrb[0].mxu0 %v189
    %v1891 = vpop.f32.mrb[0].mxu0
    %v1892 = vadd.f32 0.0, %v1891
    %v1893 = vpop.f32.mrb[0].mxu0
    %v1894 = vpop.f32.mrb[0].mxu0
    %v1895 = vadd.f32 0.0, %v1894
    %v1896 = vpop.f32.mrb[0].mxu0
    %1897 = vdwg.mxu0
    %v1898 = vpack.c.bf16 %v1838, %v1835
    %v1899 = vpack.c.bf16 %v1887, %v1884
    %v1900 = vpack.c.bf16 %v1846, %v1843
    %v1901 = vpack.c.bf16 %v1895, %v1892
    %v1902 = vld [vmem:[#allocation10] sm:$0xff]
    %v1903 = vld [vmem:[#allocation10 + $0x8] sm:$0xff]
    %v1904 = vld [vmem:[#allocation10 + $0x10] sm:$0xff]
    %v1905 = vld [vmem:[#allocation10 + $0x18] sm:$0xff]
    %v1910 = vunpack.c.l.b16 %v1902
    %v1911 = vunpack.c.h.b16 %v1902
    %v1912 = vunpack.c.l.b16 %v1903
    %v1913 = vunpack.c.h.b16 %v1903
    %v1914 = vunpack.c.l.b16 %v1904
    %v1915 = vunpack.c.h.b16 %v1904
    %v1916 = vunpack.c.l.b16 %v1905
    %v1917 = vunpack.c.h.b16 %v1905
    %v1918 = vpack.c.b16 %v1912, %v1910
    %v1919 = vpack.c.b16 %v1913, %v1911
    %v1920 = vpack.c.b16 %v1916, %v1914
    %v1921 = vpack.c.b16 %v1917, %v1915
    %vm1926 = vcmask 261120
    %v1928 = vsel %vm1926, %v1798, 0
    %v1931 = vsel %vm1926, %v1799, 0
    %1933 = vmatprep.subr.bf16.mxu0 %v1919
    %1934 = vmatpush1.bf16.msra.mxu0 %v1918
    %1935 = vmatprep.subr.bf16.mxu0 %v1921
    %1936 = vmatpush1.bf16.msra.mxu0 %v1920
    %1937 = vmatprep.subr.bf16.mxu0 0
    %1938 = vmatpush1.bf16.msra.mxu0 0
    %1939 = vmatprep.subr.bf16.mxu0 0
    %1940 = vmatpush1.bf16.msra.mxu0 0
    %1941 = vmatprep.subr.bf16.mxu0 0
    %1942 = vmatpush1.bf16.msra.mxu0 0
    %1943 = vmatprep.subr.bf16.mxu0 0
    %1944 = vmatpush1.bf16.msra.mxu0 0
    %1945 = vmatprep.subr.bf16.mxu0 0
    %1946 = vmatpush1.bf16.msra.mxu0 0
    %1947 = vmatprep.subr.bf16.mxu0 0
    %1948 = vmatpush1.bf16.msra.mxu0 0
    %1949 = vmatprep.subr.bf16.mxu0 0
    %1950 = vmatpush1.bf16.msra.mxu0 0
    %1951 = vmatprep.subr.bf16.mxu0 0
    %1952 = vmatpush1.bf16.msra.mxu0 0
    %1953 = vmatprep.subr.bf16.mxu0 0
    %1954 = vmatpush1.bf16.msra.mxu0 0
    %1955 = vmatprep.subr.bf16.mxu0 0
    %1956 = vmatpush1.bf16.msra.mxu0 0
    %1957 = vmatprep.subr.bf16.mxu0 0
    %1958 = vmatpush1.bf16.msra.mxu0 0
    %1959 = vmatprep.subr.bf16.mxu0 0
    %1960 = vmatpush1.bf16.msra.mxu0 0
    %1961 = vmatprep.subr.bf16.mxu0 0
    %1962 = vmatpush1.bf16.msra.mxu0 0
    %1963 = vmatprep.subr.bf16.mxu0 0
    %1964 = vmatpush1.bf16.msra.mxu0 0
    %1965 = vmatprep.mubr.bf16.mxu0 0
    %1966 = vmatmul.mubr.bf16.gmra.mrb[0].mxu0 %v1928
    %v1967 = vpop.f32.mrb[0].mxu0
    %v1968 = vadd.f32 0.0, %v1967
    %v1969 = vpop.f32.mrb[0].mxu0
    %v1970 = vadd.f32 0.0, %v1969
    %v1971 = vpop.f32.mrb[0].mxu0
    %v1972 = vadd.f32 0.0, %v1971
    %v1973 = vpop.f32.mrb[0].mxu0
    %v1974 = vadd.f32 0.0, %v1973
    %1975 = vmatprep.mubr.bf16.mxu0 0
    %1976 = vmatmul.mubr.bf16.gmra.mrb[0].mxu0 %v1931
    %v1977 = vpop.f32.mrb[0].mxu0
    %v1978 = vadd.f32 0.0, %v1977
    %v1979 = vpop.f32.mrb[0].mxu0
    %v1980 = vadd.f32 0.0, %v1979
    %v1981 = vpop.f32.mrb[0].mxu0
    %v1982 = vadd.f32 0.0, %v1981
    %v1983 = vpop.f32.mrb[0].mxu0
    %v1984 = vadd.f32 0.0, %v1983
    %1985 = vdwg.mxu0
    %v1986 = vadd.f32 %v1640, %v1968
    %v1987 = vadd.f32 %v1641, %v1970
    %v1988 = vadd.f32 %v1646, %v1972
    %v1989 = vadd.f32 %v1647, %v1974
    %v1990 = vadd.f32 %v1652, %v1978
    %v1991 = vadd.f32 %v1653, %v1980
    %v1992 = vadd.f32 %v1658, %v1982
    %v1993 = vadd.f32 %v1659, %v1984
    %s1994 = scalar_lea.vmem [#allocation10], 32
    %v1995 = vld [vmem:[%s1994] sm:$0xff]
    %v1996 = vld [vmem:[%s1994 + $0x8] sm:$0xff]
    %v1997 = vld [vmem:[%s1994 + $0x10] sm:$0xff]
    %v1998 = vld [vmem:[%s1994 + $0x18] sm:$0xff]
    %v2003 = vunpack.c.l.b16 %v1995
    %v2004 = vunpack.c.h.b16 %v1995
    %v2005 = vunpack.c.l.b16 %v1996
    %v2006 = vunpack.c.h.b16 %v1996
    %v2007 = vunpack.c.l.b16 %v1997
    %v2008 = vunpack.c.h.b16 %v1997
    %v2009 = vunpack.c.l.b16 %v1998
    %v2010 = vunpack.c.h.b16 %v1998
    %v2011 = vpack.c.b16 %v2005, %v2003
    %v2012 = vpack.c.b16 %v2006, %v2004
    %v2013 = vpack.c.b16 %v2009, %v2007
    %v2014 = vpack.c.b16 %v2010, %v2008
    %v2020 = vsel %vm1926, %v1898, 0
    %v2023 = vsel %vm1926, %v1899, 0
    %2025 = vmatprep.subr.bf16.mxu0 %v2012
    %2026 = vmatpush1.bf16.msra.mxu0 %v2011
    %2027 = vmatprep.subr.bf16.mxu0 %v2014
    %2028 = vmatpush1.bf16.msra.mxu0 %v2013
    %2029 = vmatprep.subr.bf16.mxu0 0
    %2030 = vmatpush1.bf16.msra.mxu0 0
    %2031 = vmatprep.subr.bf16.mxu0 0
    %2032 = vmatpush1.bf16.msra.mxu0 0
    %2033 = vmatprep.subr.bf16.mxu0 0
    %2034 = vmatpush1.bf16.msra.mxu0 0
    %2035 = vmatprep.subr.bf16.mxu0 0
    %2036 = vmatpush1.bf16.msra.mxu0 0
    %2037 = vmatprep.subr.bf16.mxu0 0
    %2038 = vmatpush1.bf16.msra.mxu0 0
    %2039 = vmatprep.subr.bf16.mxu0 0
    %2040 = vmatpush1.bf16.msra.mxu0 0
    %2041 = vmatprep.subr.bf16.mxu0 0
    %2042 = vmatpush1.bf16.msra.mxu0 0
    %2043 = vmatprep.subr.bf16.mxu0 0
    %2044 = vmatpush1.bf16.msra.mxu0 0
    %2045 = vmatprep.subr.bf16.mxu0 0
    %2046 = vmatpush1.bf16.msra.mxu0 0
    %2047 = vmatprep.subr.bf16.mxu0 0
    %2048 = vmatpush1.bf16.msra.mxu0 0
    %2049 = vmatprep.subr.bf16.mxu0 0
    %2050 = vmatpush1.bf16.msra.mxu0 0
    %2051 = vmatprep.subr.bf16.mxu0 0
    %2052 = vmatpush1.bf16.msra.mxu0 0
    %2053 = vmatprep.subr.bf16.mxu0 0
    %2054 = vmatpush1.bf16.msra.mxu0 0
    %2055 = vmatprep.subr.bf16.mxu0 0
    %2056 = vmatpush1.bf16.msra.mxu0 0
    %2057 = vmatprep.mubr.bf16.mxu0 0
    %2058 = vmatmul.mubr.bf16.gmra.mrb[0].mxu0 %v2020
    %v2059 = vpop.f32.mrb[0].mxu0
    %v2060 = vadd.f32 0.0, %v2059
    %v2061 = vpop.f32.mrb[0].mxu0
    %v2062 = vadd.f32 0.0, %v2061
    %v2063 = vpop.f32.mrb[0].mxu0
    %v2064 = vadd.f32 0.0, %v2063
    %v2065 = vpop.f32.mrb[0].mxu0
    %v2066 = vadd.f32 0.0, %v2065
    %2067 = vmatprep.mubr.bf16.mxu0 0
    %2068 = vmatmul.mubr.bf16.gmra.mrb[0].mxu0 %v2023
    %v2069 = vpop.f32.mrb[0].mxu0
    %v2070 = vadd.f32 0.0, %v2069
    %v2071 = vpop.f32.mrb[0].mxu0
    %v2072 = vadd.f32 0.0, %v2071
    %v2073 = vpop.f32.mrb[0].mxu0
    %v2074 = vadd.f32 0.0, %v2073
    %v2075 = vpop.f32.mrb[0].mxu0
    %v2076 = vadd.f32 0.0, %v2075
    %2077 = vdwg.mxu0
    %v2078 = vadd.f32 %v1986, %v2060
    %v2079 = vadd.f32 %v1987, %v2062
    %v2080 = vadd.f32 %v1988, %v2064
    %v2081 = vadd.f32 %v1989, %v2066
    %v2082 = vadd.f32 %v1990, %v2070
    %v2083 = vadd.f32 %v1991, %v2072
    %v2084 = vadd.f32 %v1992, %v2074
    %v2085 = vadd.f32 %v1993, %v2076
    %s2086 = scalar_lea.vmem [#allocation10], 64
    %v2087 = vld [vmem:[%s2086] sm:$0xff]
    %v2088 = vld [vmem:[%s2086 + $0x8] sm:$0xff]
    %v2089 = vld [vmem:[%s2086 + $0x10] sm:$0xff]
    %v2090 = vld [vmem:[%s2086 + $0x18] sm:$0xff]
    %v2095 = vunpack.c.l.b16 %v2087
    %v2096 = vunpack.c.h.b16 %v2087
    %v2097 = vunpack.c.l.b16 %v2088
    %v2098 = vunpack.c.h.b16 %v2088
    %v2099 = vunpack.c.l.b16 %v2089
    %v2100 = vunpack.c.h.b16 %v2089
    %v2101 = vunpack.c.l.b16 %v2090
    %v2102 = vunpack.c.h.b16 %v2090
    %v2103 = vpack.c.b16 %v2097, %v2095
    %v2104 = vpack.c.b16 %v2098, %v2096
    %v2105 = vpack.c.b16 %v2101, %v2099
    %v2106 = vpack.c.b16 %v2102, %v2100
    %v2112 = vsel %vm1926, %v1900, 0
    %v2115 = vsel %vm1926, %v1901, 0
    %2117 = vmatprep.subr.bf16.mxu0 %v2104
    %2118 = vmatpush1.bf16.msra.mxu0 %v2103
    %2119 = vmatprep.subr.bf16.mxu0 %v2106
    %2120 = vmatpush1.bf16.msra.mxu0 %v2105
    %2121 = vmatprep.subr.bf16.mxu0 0
    %2122 = vmatpush1.bf16.msra.mxu0 0
    %2123 = vmatprep.subr.bf16.mxu0 0
    %2124 = vmatpush1.bf16.msra.mxu0 0
    %2125 = vmatprep.subr.bf16.mxu0 0
    %2126 = vmatpush1.bf16.msra.mxu0 0
    %2127 = vmatprep.subr.bf16.mxu0 0
    %2128 = vmatpush1.bf16.msra.mxu0 0
    %2129 = vmatprep.subr.bf16.mxu0 0
    %2130 = vmatpush1.bf16.msra.mxu0 0
    %2131 = vmatprep.subr.bf16.mxu0 0
    %2132 = vmatpush1.bf16.msra.mxu0 0
    %2133 = vmatprep.subr.bf16.mxu0 0
    %2134 = vmatpush1.bf16.msra.mxu0 0
    %2135 = vmatprep.subr.bf16.mxu0 0
    %2136 = vmatpush1.bf16.msra.mxu0 0
    %2137 = vmatprep.subr.bf16.mxu0 0
    %2138 = vmatpush1.bf16.msra.mxu0 0
    %2139 = vmatprep.subr.bf16.mxu0 0
    %2140 = vmatpush1.bf16.msra.mxu0 0
    %2141 = vmatprep.subr.bf16.mxu0 0
    %2142 = vmatpush1.bf16.msra.mxu0 0
    %2143 = vmatprep.subr.bf16.mxu0 0
    %2144 = vmatpush1.bf16.msra.mxu0 0
    %2145 = vmatprep.subr.bf16.mxu0 0
    %2146 = vmatpush1.bf16.msra.mxu0 0
    %2147 = vmatprep.subr.bf16.mxu0 0
    %2148 = vmatpush1.bf16.msra.mxu0 0
    %2149 = vmatprep.mubr.bf16.mxu0 0
    %2150 = vmatmul.mubr.bf16.gmra.mrb[0].mxu0 %v2112
    %v2151 = vpop.f32.mrb[0].mxu0
    %v2152 = vadd.f32 0.0, %v2151
    %v2153 = vpop.f32.mrb[0].mxu0
    %v2154 = vadd.f32 0.0, %v2153
    %v2155 = vpop.f32.mrb[0].mxu0
    %v2156 = vadd.f32 0.0, %v2155
    %v2157 = vpop.f32.mrb[0].mxu0
    %v2158 = vadd.f32 0.0, %v2157
    %2159 = vmatprep.mubr.bf16.mxu0 0
    %2160 = vmatmul.mubr.bf16.gmra.mrb[0].mxu0 %v2115
    %v2161 = vpop.f32.mrb[0].mxu0
    %v2162 = vadd.f32 0.0, %v2161
    %v2163 = vpop.f32.mrb[0].mxu0
    %v2164 = vadd.f32 0.0, %v2163
    %v2165 = vpop.f32.mrb[0].mxu0
    %v2166 = vadd.f32 0.0, %v2165
    %v2167 = vpop.f32.mrb[0].mxu0
    %v2168 = vadd.f32 0.0, %v2167
    %2169 = vdwg.mxu0
    %v2170 = vadd.f32 %v2078, %v2152
    %v2171 = vadd.f32 %v2079, %v2154
    %v2172 = vadd.f32 %v2080, %v2156
    %v2173 = vadd.f32 %v2081, %v2158
    %v2174 = vadd.f32 %v2082, %v2162
    %v2175 = vadd.f32 %v2083, %v2164
    %v2176 = vadd.f32 %v2084, %v2166
    %v2177 = vadd.f32 %v2085, %v2168
    %v2178 = vmul.f32 %v2170, %v170
    %v2179 = vmul.f32 %v2171, %v171
    %v2180 = vmul.f32 %v2172, %v172
    %v2181 = vmul.f32 %v2173, %v173
    %v2182 = vmul.f32 %v2174, %v170
    %v2183 = vmul.f32 %v2175, %v171
    %v2184 = vmul.f32 %v2176, %v172
    %v2185 = vmul.f32 %v2177, %v173
    %v2186 = vadd.f32 %v2178, %v2179
    %v2187 = vadd.f32 %v2180, %v2181
    %v2188 = vadd.f32 %v2182, %v2183
    %v2189 = vadd.f32 %v2184, %v2185
    %2190 = vrot.lane.b32.xlu0 %v2186, 64
    %v2191 = vpop.permute.xlu0 %2190
    %2192 = vrot.lane.b32.xlu0 %v2187, 64
    %v2193 = vpop.permute.xlu0 %2192
    %2194 = vrot.lane.b32.xlu0 %v2188, 64
    %v2195 = vpop.permute.xlu0 %2194
    %2196 = vrot.lane.b32.xlu0 %v2189, 64
    %v2197 = vpop.permute.xlu0 %2196
    %v2198 = vadd.f32 %v2186, %v2191
    %v2199 = vadd.f32 %v2187, %v2193
    %v2200 = vadd.f32 %v2188, %v2195
    %v2201 = vadd.f32 %v2189, %v2197
    %2202 = vrot.lane.b32.xlu0 %v2198, 96
    %v2203 = vpop.permute.xlu0 %2202
    %2204 = vrot.lane.b32.xlu0 %v2199, 96
    %v2205 = vpop.permute.xlu0 %2204
    %2206 = vrot.lane.b32.xlu0 %v2200, 96
    %v2207 = vpop.permute.xlu0 %2206
    %2208 = vrot.lane.b32.xlu0 %v2201, 96
    %v2209 = vpop.permute.xlu0 %2208
    %v2210 = vadd.f32 %v2198, %v2203
    %v2211 = vadd.f32 %v2199, %v2205
    %v2212 = vadd.f32 %v2200, %v2207
    %v2213 = vadd.f32 %v2201, %v2209
    %v2214 = vld [vmem:[#allocation16] sm:$0xff]
    %v2215 = vld [vmem:[#allocation16 + $0x8] sm:$0xff]
    %v2216 = vadd.f32 %v2210, %v2214
    %v2217 = vadd.f32 %v2211, %v2215
    %v2218 = vadd.f32 %v2212, %v2214
    %v2219 = vadd.f32 %v2213, %v2215
    %v2220 = vtanh.pop %v2216
    %v2221 = vtanh.pop %v2217
    %v2222 = vtanh.pop %v2218
    %v2223 = vtanh.pop %v2219
    %v2224 = vmul.f32 %v1787, %v156
    %v2225 = vmul.f32 %v1789, %v157
    %v2226 = vmul.f32 %v1791, %v158
    %v2227 = vmul.f32 %v1793, %v159
    %v2228 = vsub.f32 1.0, %v1787
    %v2229 = vsub.f32 1.0, %v1789
    %v2230 = vsub.f32 1.0, %v1791
    %v2231 = vsub.f32 1.0, %v1793
    %v2232 = vmul.f32 %v2228, %v2220
    %v2233 = vmul.f32 %v2229, %v2221
    %v2234 = vmul.f32 %v2230, %v2222
    %v2235 = vmul.f32 %v2231, %v2223
    %v2236 = vadd.f32 %v2224, %v2232
    %v2237 = vadd.f32 %v2225, %v2233
    %v2238 = vadd.f32 %v2226, %v2234
    %v2239 = vadd.f32 %v2227, %v2235
    %2240 = vst.msk [vmem:[#allocation17] sm:$0xff] %vm1926, %v2236
    %2241 = vst.msk [vmem:[#allocation17 + $0x8] sm:$0xff] %vm1926, %v2237
    %2242 = vst.msk [vmem:[#allocation17 + $0x10] sm:$0xff] %vm1926, %v2238
    %2243 = vst.msk [vmem:[#allocation17 + $0x18] sm:$0xff] %vm1926, %v2239
    // Predicated region
    $region74: #{tpu_custom_call.1} parent=1 // pred_check
      _
    $region75: #{tpu_custom_call.1} parent=1 // pred_check_branch
      %2245 = sbr.rel (0) target = $region77
    $region76: #{tpu_custom_call.1} parent=1 // pred_region
      %s2247 = ssub.s32 512, 512
      %2248 = vsyncadd [#allocation4], %s2247
      %s2249 = sshll.u32 [#allocation17], 4
      %s2250 = int_to_ptr.vmem [resolvable:$true] %s2249
      %2255 = dma.vmem_to_hbm [thread:$0]  %s2250, 512, %s9, [#allocation4], 128, 128, 8
    $region77: #{tpu_custom_call.1} parent=1 // pred_fallthru
      _
    // Predicated region
    $region78: #{tpu_custom_call.1} parent=1 // pred_check
      _
    $region79: #{tpu_custom_call.1} parent=1 // pred_check_branch
      %2257 = sbr.rel (0) target = $region81
    $region80: #{tpu_custom_call.1} parent=1 // pred_region
      %2258 = dma.done [#allocation4], 512
    $region81: #{tpu_custom_call.1} parent=1 // pred_fallthru
      _
    %2259 = vsyncpa [#allocation3], 1
    %2260 = vsyncpa [#allocation6], 1
    %2261 = vsyncpa [#allocation9], 1
    %2262 = vsyncpa [#allocation12], 1
    %2263 = vsyncpa [#allocation15], 1
    %2264 = vsyncpa [#allocation4], 1

</llo_original>
